<compile_context>
chip_gen: v5e
topology: v5e:2x2
jax: 0.10.0
libtpu: 0.0.40
codegen_flags: <defaults>
</compile_context>

<pallas_src>
import functools

import jax
import jax.numpy as jnp
from jax.experimental import pallas as pl
from jax.experimental.pallas import tpu as pltpu

_SUBLANE = 8  # second-to-last dim alignment target


def _round_up(n, m):
    return ((n + m - 1) // m) * m


def _detect_num_cores():
    """Best-effort TensorCore count per chip (megacore / v7x split target)."""
    try:
        kind = (jax.devices()[0].device_kind or "").lower()
    except Exception:
        return 1
    # v4 / v5p megacore and v7x expose 2 TensorCores per chip; v5e/v6e have 1.
    if "v4" in kind or "v5p" in kind or "7" in kind:
        return 2
    return 1


def _choose_tiling(batch, n_cores, max_tile_b):
    """Minimal-padding batch tiling: tile_b multiple of 8, n_steps ~= n_cores."""
    b8 = _round_up(batch, _SUBLANE)
    n_steps = max(n_cores, pl.cdiv(b8, max_tile_b))
    tile_b = _round_up(pl.cdiv(b8, n_steps), _SUBLANE)
    n_steps = pl.cdiv(b8, tile_b)  # rounding may have removed a step
    return tile_b, n_steps, tile_b * n_steps


def _linear_decoder_kernel(x_ref, w1_ref, b1_ref, w2_ref, b2_ref, o_ref):
    # Fused 2-layer MLP on one (tile_b, z_dim) row tile.
    hp = jax.lax.Precision.HIGHEST  # true f32 matmul (PyTorch parity)
    x = x_ref[...]
    h = jnp.dot(x, w1_ref[...], precision=hp,
                preferred_element_type=jnp.float32) + b1_ref[...]
    h = jnp.maximum(h, 0.0)
    h = jnp.dot(h, w2_ref[...], precision=hp,
                preferred_element_type=jnp.float32) + b2_ref[...]
    h = jnp.maximum(h, 0.0)
    o_ref[...] = h.astype(o_ref.dtype)


@functools.partial(jax.jit, static_argnames=("max_tile_b", "n_cores"))
def _forward_impl(x, w1, b1, w2, b2, *, max_tile_b, n_cores):
    B, z_dim = x.shape
    outd = w2.shape[1]

    tile_b, n_steps, B_p = _choose_tiling(B, n_cores, max_tile_b)

    # Pad batch only up to the tile grid (e.g. 300 -> 304); rows are
    # independent, so the padded rows never influence valid outputs.
    if B_p != B:
        x = jnp.pad(x, ((0, B_p - B), (0, 0)))

    flops = 2 * B_p * (z_dim + outd) * outd
    bytes_accessed = 4 * (B_p * z_dim            # x
                          + z_dim * outd + outd  # fc_1
                          + outd * outd + outd   # fc_2
                          + B_p * outd)          # out

    out = pl.pallas_call(
        _linear_decoder_kernel,
        out_shape=jax.ShapeDtypeStruct((B_p, outd), x.dtype),
        grid=(n_steps,),
        in_specs=[
            # activations: tiled along batch
            pl.BlockSpec((tile_b, z_dim), lambda i: (i, 0)),
            # params: constant index_map -> fetched once, VMEM-resident
            pl.BlockSpec((z_dim, outd), lambda i: (0, 0)),
            pl.BlockSpec((1, outd), lambda i: (0, 0)),
            pl.BlockSpec((outd, outd), lambda i: (0, 0)),
            pl.BlockSpec((1, outd), lambda i: (0, 0)),
        ],
        out_specs=pl.BlockSpec((tile_b, outd), lambda i: (i, 0)),
        compiler_params=pltpu.CompilerParams(
            dimension_semantics=("parallel",)),
        cost_estimate=pl.CostEstimate(
            flops=flops, transcendentals=0, bytes_accessed=bytes_accessed),
    )(x, w1, b1, w2, b2)

    if B_p != B:
        out = out[:B]
    return out


def prepare_params(params):
    """One-time param prep (hoisted out of the per-call path).

    `params` = [(W1[z_dim, outd], b1[outd]), (W2[outd, outd], b2[outd])]
    with weights already in [in, out] layout (transpose PyTorch's [out, in]).
    """
    (w1, b1), (w2, b2) = params
    return (jnp.asarray(w1, jnp.float32),
            jnp.asarray(b1, jnp.float32).reshape(1, -1),
            jnp.asarray(w2, jnp.float32),
            jnp.asarray(b2, jnp.float32).reshape(1, -1))


def linear_decoder_forward(x, prepared_params, *, max_tile_b=2048, n_cores=None):
    """x: [B, z_dim] float32; prepared_params from prepare_params()."""
    if n_cores is None:
        n_cores = _detect_num_cores()
    w1, b1, w2, b2 = prepared_params
    return _forward_impl(x, w1, b1, w2, b2,
                         max_tile_b=max_tile_b, n_cores=n_cores)


def _init_linear(key, d_in, d_out):
    # Deterministic synthetic init (PyTorch-Linear-like uniform scale),
    # weight stored as [in, out].
    kw, kb = jax.random.split(key)
    bound = 1.0 / (d_in ** 0.5)
    w = jax.random.uniform(kw, (d_in, d_out), jnp.float32, -bound, bound)
    b = jax.random.uniform(kb, (d_out,), jnp.float32, -bound, bound)
    return w, b


def _reference_forward(x, params):
    (w1, b1), (w2, b2) = params
    hp = jax.lax.Precision.HIGHEST
    h = jnp.maximum(jnp.dot(x, w1, precision=hp) + b1, 0.0)
    return jnp.maximum(jnp.dot(h, w2, precision=hp) + b2, 0.0)


if __name__ == "__main__":
    key = jax.random.PRNGKey(0)
    k_x, k1, k2 = jax.random.split(key, 3)

    # B deliberately not a multiple of 8 to exercise the minimal batch pad;
    # outd=64 exercises the "full-array-dim lane" (unpadded feature) path.
    B, Z_DIM, OUTD = 300, 32, 64
    x = jax.random.normal(k_x, (B, Z_DIM), jnp.float32)

    params = [
        _init_linear(k1, Z_DIM, OUTD),   # fc_1: Linear(z_dim, outd)
        _init_linear(k2, OUTD, OUTD),    # fc_2: Linear(outd, outd)
    ]
    prepared = prepare_params(params)    # one-time (outside the hot path)

    out = linear_decoder_forward(x, prepared)
    out = jax.block_until_ready(out)

    ref = _reference_forward(x, params)
    assert out.shape == (B, OUTD), out.shape
    assert jnp.allclose(out, ref, atol=1e-4, rtol=1e-4), \
        float(jnp.max(jnp.abs(out - ref)))

    print("KERNEL_OK")
</pallas_src>

<mosaic_0001>
module attributes {stable_mosaic.version = 11 : i64} {
  func.func @_linear_decoder_kernel(%arg0: i32, %arg1: memref<304x32xf32, #tpu.memory_space<vmem>>, %arg2: memref<32x64xf32, #tpu.memory_space<vmem>>, %arg3: memref<1x64xf32, #tpu.memory_space<vmem>>, %arg4: memref<64x64xf32, #tpu.memory_space<vmem>>, %arg5: memref<1x64xf32, #tpu.memory_space<vmem>>, %arg6: memref<304x64xf32, #tpu.memory_space<vmem>>) attributes {dimension_semantics = [#tpu.dimension_semantics<parallel>], iteration_bounds = array<i64: 1>, scalar_prefetch = 0 : i64, scratch_operands = 0 : i64, tpu.core_type = #tpu.core_type<tc>, window_params = [{transform_indices = @transform_0, window_bounds = array<i64: 304, 32>}, {pipeline_mode = #tpu.pipeline_mode<synchronous>, transform_indices = @transform_1, window_bounds = array<i64: 32, 64>}, {pipeline_mode = #tpu.pipeline_mode<synchronous>, transform_indices = @transform_2, window_bounds = array<i64: 1, 64>}, {pipeline_mode = #tpu.pipeline_mode<synchronous>, transform_indices = @transform_3, window_bounds = array<i64: 64, 64>}, {pipeline_mode = #tpu.pipeline_mode<synchronous>, transform_indices = @transform_4, window_bounds = array<i64: 1, 64>}, {transform_indices = @transform_5, window_bounds = array<i64: 304, 64>}]} {
    %c0 = arith.constant 0 : index
    %c0_0 = arith.constant 0 : index
    %0 = vector.load %arg1[%c0, %c0_0] : memref<304x32xf32, #tpu.memory_space<vmem>>, vector<304x32xf32>
    %c0_1 = arith.constant 0 : index
    %c0_2 = arith.constant 0 : index
    %1 = vector.load %arg2[%c0_1, %c0_2] : memref<32x64xf32, #tpu.memory_space<vmem>>, vector<32x64xf32>
    %cst = arith.constant dense<0.000000e+00> : vector<304x64xf32>
    %2 = tpu.matmul %0, %1, %cst {dimension_numbers = #tpu.dot_dimension_numbers<[1], [0], [0], [1], [0, 0, 1, 1], [], []>, precision = #tpu.contract_precision<fp32>} : vector<304x32xf32>, vector<32x64xf32>, vector<304x64xf32> -> vector<304x64xf32>
    %c0_3 = arith.constant 0 : index
    %c0_4 = arith.constant 0 : index
    %3 = vector.load %arg3[%c0_3, %c0_4] : memref<1x64xf32, #tpu.memory_space<vmem>>, vector<1x64xf32>
    %4 = vector.broadcast %3 : vector<1x64xf32> to vector<304x64xf32>
    %5 = arith.addf %2, %4 : vector<304x64xf32>
    %cst_5 = arith.constant 0.000000e+00 : f32
    %6 = vector.broadcast %cst_5 : f32 to vector<304x64xf32>
    %7 = arith.maximumf %5, %6 : vector<304x64xf32>
    %c0_6 = arith.constant 0 : index
    %c0_7 = arith.constant 0 : index
    %8 = vector.load %arg4[%c0_6, %c0_7] : memref<64x64xf32, #tpu.memory_space<vmem>>, vector<64x64xf32>
    %cst_8 = arith.constant dense<0.000000e+00> : vector<304x64xf32>
    %9 = tpu.matmul %7, %8, %cst_8 {dimension_numbers = #tpu.dot_dimension_numbers<[1], [0], [0], [1], [0, 0, 1, 1], [], []>, precision = #tpu.contract_precision<fp32>} : vector<304x64xf32>, vector<64x64xf32>, vector<304x64xf32> -> vector<304x64xf32>
    %c0_9 = arith.constant 0 : index
    %c0_10 = arith.constant 0 : index
    %10 = vector.load %arg5[%c0_9, %c0_10] : memref<1x64xf32, #tpu.memory_space<vmem>>, vector<1x64xf32>
    %11 = vector.broadcast %10 : vector<1x64xf32> to vector<304x64xf32>
    %12 = arith.addf %9, %11 : vector<304x64xf32>
    %cst_11 = arith.constant 0.000000e+00 : f32
    %13 = vector.broadcast %cst_11 : f32 to vector<304x64xf32>
    %14 = arith.maximumf %12, %13 : vector<304x64xf32>
    %c0_12 = arith.constant 0 : index
    %c0_13 = arith.constant 0 : index
    %15 = vector.load %arg6[%c0_12, %c0_13] : memref<304x64xf32, #tpu.memory_space<vmem>>, vector<304x64xf32>
    tpu.vector_store %arg6[%c0_12, %c0_13], %14 {strides = array<i32>} : memref<304x64xf32, #tpu.memory_space<vmem>>, vector<304x64xf32>,
    return
  }
  func.func @transform_0(%arg0: i32) -> (i32, i32) {
    %c0_i32 = arith.constant 0 : i32
    %c0_i32_0 = arith.constant 0 : i32
    return %arg0, %c0_i32 : i32, i32
  }
  func.func @transform_1(%arg0: i32) -> (i32, i32) {
    %c0_i32 = arith.constant 0 : i32
    %c0_i32_0 = arith.constant 0 : i32
    %c0_i32_1 = arith.constant 0 : i32
    return %c0_i32, %c0_i32_0 : i32, i32
  }
  func.func @transform_2(%arg0: i32) -> (i32, i32) {
    %c0_i32 = arith.constant 0 : i32
    %c0_i32_0 = arith.constant 0 : i32
    %c0_i32_1 = arith.constant 0 : i32
    return %c0_i32, %c0_i32_0 : i32, i32
  }
  func.func @transform_3(%arg0: i32) -> (i32, i32) {
    %c0_i32 = arith.constant 0 : i32
    %c0_i32_0 = arith.constant 0 : i32
    %c0_i32_1 = arith.constant 0 : i32
    return %c0_i32, %c0_i32_0 : i32, i32
  }
  func.func @transform_4(%arg0: i32) -> (i32, i32) {
    %c0_i32 = arith.constant 0 : i32
    %c0_i32_0 = arith.constant 0 : i32
    %c0_i32_1 = arith.constant 0 : i32
    return %c0_i32, %c0_i32_0 : i32, i32
  }
  func.func @transform_5(%arg0: i32) -> (i32, i32) {
    %c0_i32 = arith.constant 0 : i32
    %c0_i32_0 = arith.constant 0 : i32
    return %arg0, %c0_i32 : i32, i32
  }
}

</mosaic_0001>

<llo_original>
// kernel: _forward_impl.1
$region0: #{_forward_impl.1}
  #allocation0 [shape = 'u32[]', space=smem, size = 0x4, offset = 0x4, fixed_abs, tag = 'smem constant byte address 0x4 - core index']
  #allocation1 [shape = 'u32[72,128]{1,0:T(1,128)}', space=vmem, size = 0x9000, scoped, tag = 'internal scratch']
  %s0 = inlined_call_operand.vmem [shape: f32[304,32], index: 0, kind: input, shape index: {}]
  %s1 = inlined_call_operand.vmem [shape: f32[32,64], index: 1, kind: input, shape index: {}]
  %s2 = inlined_call_operand.vmem [shape: f32[1,64], index: 2, kind: input, shape index: {}]
  %s3 = inlined_call_operand.vmem [shape: f32[64,64], index: 3, kind: input, shape index: {}]
  %s4 = inlined_call_operand.vmem [shape: f32[1,64], index: 4, kind: input, shape index: {}]
  %s5 = inlined_call_operand.vmem [shape: f32[304,64], index: 5, kind: output, shape index: {}]
  %s6 = sld [smem:[#allocation0]]
  $region30: #{_forward_impl.1} parent=0
    _
  %s8 = ssub.s32 1, %s6
  %s9 = scalar_select 0, %s8, %s6
  // Predicated region
  $region2: #{_forward_impl.1} parent=0 // pred_check
    _
  $region3: #{_forward_impl.1} parent=0 // pred_check_branch
    %11 = sbr.rel (0) target = $region5
  $region4: #{_forward_impl.1} parent=0 // pred_region
    _
  $region5: #{_forward_impl.1} parent=0 // pred_fallthru
    _
  // Predicated region
  $region6: #{_forward_impl.1} parent=0 // pred_check
    _
  $region7: #{_forward_impl.1} parent=0 // pred_check_branch
    %13 = sbr.rel (0) target = $region9
  $region8: #{_forward_impl.1} parent=0 // pred_region
    _
  $region9: #{_forward_impl.1} parent=0 // pred_fallthru
    _
  // Predicated region
  $region10: #{_forward_impl.1} parent=0 // pred_check
    _
  $region11: #{_forward_impl.1} parent=0 // pred_check_branch
    %15 = sbr.rel (0) target = $region13
  $region12: #{_forward_impl.1} parent=0 // pred_region
    _
  $region13: #{_forward_impl.1} parent=0 // pred_fallthru
    _
  // Predicated region
  $region14: #{_forward_impl.1} parent=0 // pred_check
    _
  $region15: #{_forward_impl.1} parent=0 // pred_check_branch
    %17 = sbr.rel (0) target = $region17
  $region16: #{_forward_impl.1} parent=0 // pred_region
    _
  $region17: #{_forward_impl.1} parent=0 // pred_fallthru
    _
  // Predicated region
  $region18: #{_forward_impl.1} parent=0 // pred_check
    _
  $region19: #{_forward_impl.1} parent=0 // pred_check_branch
    %19 = sbr.rel (0) target = $region21
  $region20: #{_forward_impl.1} parent=0 // pred_region
    _
  $region21: #{_forward_impl.1} parent=0 // pred_fallthru
    _
  %v20 = vld [vmem:[%s0] sm:$0xff]
  %v21 = vld [vmem:[%s0 + $0x8] sm:$0xff]
  %v22 = vld [vmem:[%s0 + $0x10] sm:$0xff]
  %v23 = vld [vmem:[%s0 + $0x18] sm:$0xff]
  %v24 = vld [vmem:[%s0 + $0x20] sm:$0xff]
  %v25 = vld [vmem:[%s0 + $0x28] sm:$0xff]
  %v26 = vld [vmem:[%s0 + $0x30] sm:$0xff]
  %v27 = vld [vmem:[%s0 + $0x38] sm:$0xff]
  %v28 = vld [vmem:[%s0 + $0x40] sm:$0xff]
  %v29 = vld [vmem:[%s0 + $0x48] sm:$0xff]
  %v30 = vld [vmem:[%s0 + $0x50] sm:$0xff]
  %v31 = vld [vmem:[%s0 + $0x58] sm:$0xff]
  %v32 = vld [vmem:[%s0 + $0x60] sm:$0xff]
  %v33 = vld [vmem:[%s0 + $0x68] sm:$0xff]
  %v34 = vld [vmem:[%s0 + $0x70] sm:$0xff]
  %v35 = vld [vmem:[%s0 + $0x78] sm:$0xff]
  %v36 = vld [vmem:[%s0 + $0x80] sm:$0xff]
  %v37 = vld [vmem:[%s0 + $0x88] sm:$0xff]
  %v38 = vld [vmem:[%s0 + $0x90] sm:$0xff]
  %v39 = vld [vmem:[%s0 + $0x98] sm:$0xff]
  %v40 = vld [vmem:[%s0 + $0xa0] sm:$0xff]
  %v41 = vld [vmem:[%s0 + $0xa8] sm:$0xff]
  %v42 = vld [vmem:[%s0 + $0xb0] sm:$0xff]
  %v43 = vld [vmem:[%s0 + $0xb8] sm:$0xff]
  %v44 = vld [vmem:[%s0 + $0xc0] sm:$0xff]
  %v45 = vld [vmem:[%s0 + $0xc8] sm:$0xff]
  %v46 = vld [vmem:[%s0 + $0xd0] sm:$0xff]
  %v47 = vld [vmem:[%s0 + $0xd8] sm:$0xff]
  %v48 = vld [vmem:[%s0 + $0xe0] sm:$0xff]
  %v49 = vld [vmem:[%s0 + $0xe8] sm:$0xff]
  %v50 = vld [vmem:[%s0 + $0xf0] sm:$0xff]
  %v51 = vld [vmem:[%s0 + $0xf8] sm:$0xff]
  %v52 = vld [vmem:[%s0 + $0x100] sm:$0xff]
  %v53 = vld [vmem:[%s0 + $0x108] sm:$0xff]
  %v54 = vld [vmem:[%s0 + $0x110] sm:$0xff]
  %v55 = vld [vmem:[%s0 + $0x118] sm:$0xff]
  %v56 = vld [vmem:[%s0 + $0x120] sm:$0xff]
  %v57 = vld [vmem:[%s0 + $0x128] sm:$0xff]
  %v58 = vld [vmem:[%s1] sm:$0xff]
  %v59 = vld [vmem:[%s1 + $0x8] sm:$0xff]
  %v60 = vld [vmem:[%s1 + $0x10] sm:$0xff]
  %v61 = vld [vmem:[%s1 + $0x18] sm:$0xff]
  %v62 = vld [vmem:[%s2] sm:$0x1]
  %v64 = vperm.slane %v62, 0
  %vm66 = vcmask 261120
  %v68 = vsel %vm66, %v20, 0
  %v71 = vsel %vm66, %v21, 0
  %v74 = vsel %vm66, %v22, 0
  %v77 = vsel %vm66, %v23, 0
  %v80 = vsel %vm66, %v24, 0
  %v83 = vsel %vm66, %v25, 0
  %v86 = vsel %vm66, %v26, 0
  %v89 = vsel %vm66, %v27, 0
  %v92 = vsel %vm66, %v28, 0
  %v95 = vsel %vm66, %v29, 0
  %v98 = vsel %vm66, %v30, 0
  %v101 = vsel %vm66, %v31, 0
  %v104 = vsel %vm66, %v32, 0
  %v107 = vsel %vm66, %v33, 0
  %v110 = vsel %vm66, %v34, 0
  %v113 = vsel %vm66, %v35, 0
  %v116 = vsel %vm66, %v36, 0
  %v119 = vsel %vm66, %v37, 0
  %v122 = vsel %vm66, %v38, 0
  %v125 = vsel %vm66, %v39, 0
  %v128 = vsel %vm66, %v40, 0
  %v131 = vsel %vm66, %v41, 0
  %v134 = vsel %vm66, %v42, 0
  %v137 = vsel %vm66, %v43, 0
  %v140 = vsel %vm66, %v44, 0
  %v143 = vsel %vm66, %v45, 0
  %v146 = vsel %vm66, %v46, 0
  %v149 = vsel %vm66, %v47, 0
  %v152 = vsel %vm66, %v48, 0
  %v155 = vsel %vm66, %v49, 0
  %v158 = vsel %vm66, %v50, 0
  %v161 = vsel %vm66, %v51, 0
  %v164 = vsel %vm66, %v52, 0
  %v167 = vsel %vm66, %v53, 0
  %v170 = vsel %vm66, %v54, 0
  %v173 = vsel %vm66, %v55, 0
  %v176 = vsel %vm66, %v56, 0
  %v179 = vsel %vm66, %v57, 0
  %181 = vmatpush.msra.mxu0 0.0
  %182 = vmatpush.msra.mxu0 0.0
  %183 = vmatpush.msra.mxu0 0.0
  %184 = vmatpush.msra.mxu0 0.0
  %185 = vmatpush.msra.mxu0 0.0
  %186 = vmatpush.msra.mxu0 0.0
  %187 = vmatpush.msra.mxu0 0.0
  %188 = vmatpush.msra.mxu0 0.0
  %189 = vmatpush.msra.mxu0 0.0
  %190 = vmatpush.msra.mxu0 0.0
  %191 = vmatpush.msra.mxu0 0.0
  %192 = vmatpush.msra.mxu0 0.0
  %v193 = vand.u32 %v61, 4294901760
  %194 = vmatpush.msra.mxu0 %v193
  %v195 = vand.u32 %v60, 4294901760
  %196 = vmatpush.msra.mxu0 %v195
  %v197 = vand.u32 %v59, 4294901760
  %198 = vmatpush.msra.mxu0 %v197
  %v199 = vand.u32 %v58, 4294901760
  %200 = vmatpush.msra.mxu0 %v199
  %v201 = vand.u32 %v68, 4294901760
  %v202 = vsub.f32 %v68, %v201
  %v203 = vand.u32 %v202, 4294901760
  %v204 = vsub.f32 %v202, %v203
  %v205 = vand.u32 %v204, 4294901760
  %206 = vmatmul.f32.gmra.mxu0 %v205
  %v207 = vpop.f32.mrf.mxu0
  %v208 = vadd.f32 %v64, %v207
  %v209 = vand.u32 %v71, 4294901760
  %v210 = vsub.f32 %v71, %v209
  %v211 = vand.u32 %v210, 4294901760
  %v212 = vsub.f32 %v210, %v211
  %v213 = vand.u32 %v212, 4294901760
  %214 = vmatmul.f32.gmra.mxu0 %v213
  %v215 = vpop.f32.mrf.mxu0
  %v216 = vadd.f32 %v64, %v215
  %v217 = vand.u32 %v74, 4294901760
  %v218 = vsub.f32 %v74, %v217
  %v219 = vand.u32 %v218, 4294901760
  %v220 = vsub.f32 %v218, %v219
  %v221 = vand.u32 %v220, 4294901760
  %222 = vmatmul.f32.gmra.mxu0 %v221
  %v223 = vpop.f32.mrf.mxu0
  %v224 = vadd.f32 %v64, %v223
  %v225 = vand.u32 %v77, 4294901760
  %v226 = vsub.f32 %v77, %v225
  %v227 = vand.u32 %v226, 4294901760
  %v228 = vsub.f32 %v226, %v227
  %v229 = vand.u32 %v228, 4294901760
  %230 = vmatmul.f32.gmra.mxu0 %v229
  %v231 = vpop.f32.mrf.mxu0
  %v232 = vadd.f32 %v64, %v231
  %v233 = vand.u32 %v80, 4294901760
  %v234 = vsub.f32 %v80, %v233
  %v235 = vand.u32 %v234, 4294901760
  %v236 = vsub.f32 %v234, %v235
  %v237 = vand.u32 %v236, 4294901760
  %238 = vmatmul.f32.gmra.mxu0 %v237
  %v239 = vpop.f32.mrf.mxu0
  %v240 = vadd.f32 %v64, %v239
  %v241 = vand.u32 %v83, 4294901760
  %v242 = vsub.f32 %v83, %v241
  %v243 = vand.u32 %v242, 4294901760
  %v244 = vsub.f32 %v242, %v243
  %v245 = vand.u32 %v244, 4294901760
  %246 = vmatmul.f32.gmra.mxu0 %v245
  %v247 = vpop.f32.mrf.mxu0
  %v248 = vadd.f32 %v64, %v247
  %v249 = vand.u32 %v86, 4294901760
  %v250 = vsub.f32 %v86, %v249
  %v251 = vand.u32 %v250, 4294901760
  %v252 = vsub.f32 %v250, %v251
  %v253 = vand.u32 %v252, 4294901760
  %254 = vmatmul.f32.gmra.mxu0 %v253
  %v255 = vpop.f32.mrf.mxu0
  %v256 = vadd.f32 %v64, %v255
  %v257 = vand.u32 %v89, 4294901760
  %v258 = vsub.f32 %v89, %v257
  %v259 = vand.u32 %v258, 4294901760
  %v260 = vsub.f32 %v258, %v259
  %v261 = vand.u32 %v260, 4294901760
  %262 = vmatmul.f32.gmra.mxu0 %v261
  %v263 = vpop.f32.mrf.mxu0
  %v264 = vadd.f32 %v64, %v263
  %v265 = vand.u32 %v92, 4294901760
  %v266 = vsub.f32 %v92, %v265
  %v267 = vand.u32 %v266, 4294901760
  %v268 = vsub.f32 %v266, %v267
  %v269 = vand.u32 %v268, 4294901760
  %270 = vmatmul.f32.gmra.mxu0 %v269
  %v271 = vpop.f32.mrf.mxu0
  %v272 = vadd.f32 %v64, %v271
  %v273 = vand.u32 %v95, 4294901760
  %v274 = vsub.f32 %v95, %v273
  %v275 = vand.u32 %v274, 4294901760
  %v276 = vsub.f32 %v274, %v275
  %v277 = vand.u32 %v276, 4294901760
  %278 = vmatmul.f32.gmra.mxu0 %v277
  %v279 = vpop.f32.mrf.mxu0
  %v280 = vadd.f32 %v64, %v279
  %v281 = vand.u32 %v98, 4294901760
  %v282 = vsub.f32 %v98, %v281
  %v283 = vand.u32 %v282, 4294901760
  %v284 = vsub.f32 %v282, %v283
  %v285 = vand.u32 %v284, 4294901760
  %286 = vmatmul.f32.gmra.mxu0 %v285
  %v287 = vpop.f32.mrf.mxu0
  %v288 = vadd.f32 %v64, %v287
  %v289 = vand.u32 %v101, 4294901760
  %v290 = vsub.f32 %v101, %v289
  %v291 = vand.u32 %v290, 4294901760
  %v292 = vsub.f32 %v290, %v291
  %v293 = vand.u32 %v292, 4294901760
  %294 = vmatmul.f32.gmra.mxu0 %v293
  %v295 = vpop.f32.mrf.mxu0
  %v296 = vadd.f32 %v64, %v295
  %v297 = vand.u32 %v104, 4294901760
  %v298 = vsub.f32 %v104, %v297
  %v299 = vand.u32 %v298, 4294901760
  %v300 = vsub.f32 %v298, %v299
  %v301 = vand.u32 %v300, 4294901760
  %302 = vmatmul.f32.gmra.mxu0 %v301
  %v303 = vpop.f32.mrf.mxu0
  %v304 = vadd.f32 %v64, %v303
  %v305 = vand.u32 %v107, 4294901760
  %v306 = vsub.f32 %v107, %v305
  %v307 = vand.u32 %v306, 4294901760
  %v308 = vsub.f32 %v306, %v307
  %v309 = vand.u32 %v308, 4294901760
  %310 = vmatmul.f32.gmra.mxu0 %v309
  %v311 = vpop.f32.mrf.mxu0
  %v312 = vadd.f32 %v64, %v311
  %v313 = vand.u32 %v110, 4294901760
  %v314 = vsub.f32 %v110, %v313
  %v315 = vand.u32 %v314, 4294901760
  %v316 = vsub.f32 %v314, %v315
  %v317 = vand.u32 %v316, 4294901760
  %318 = vmatmul.f32.gmra.mxu0 %v317
  %v319 = vpop.f32.mrf.mxu0
  %v320 = vadd.f32 %v64, %v319
  %v321 = vand.u32 %v113, 4294901760
  %v322 = vsub.f32 %v113, %v321
  %v323 = vand.u32 %v322, 4294901760
  %v324 = vsub.f32 %v322, %v323
  %v325 = vand.u32 %v324, 4294901760
  %326 = vmatmul.f32.gmra.mxu0 %v325
  %v327 = vpop.f32.mrf.mxu0
  %v328 = vadd.f32 %v64, %v327
  %v329 = vand.u32 %v116, 4294901760
  %v330 = vsub.f32 %v116, %v329
  %v331 = vand.u32 %v330, 4294901760
  %v332 = vsub.f32 %v330, %v331
  %v333 = vand.u32 %v332, 4294901760
  %334 = vmatmul.f32.gmra.mxu0 %v333
  %v335 = vpop.f32.mrf.mxu0
  %v336 = vadd.f32 %v64, %v335
  %v337 = vand.u32 %v119, 4294901760
  %v338 = vsub.f32 %v119, %v337
  %v339 = vand.u32 %v338, 4294901760
  %v340 = vsub.f32 %v338, %v339
  %v341 = vand.u32 %v340, 4294901760
  %342 = vmatmul.f32.gmra.mxu0 %v341
  %v343 = vpop.f32.mrf.mxu0
  %v344 = vadd.f32 %v64, %v343
  %v345 = vand.u32 %v122, 4294901760
  %v346 = vsub.f32 %v122, %v345
  %v347 = vand.u32 %v346, 4294901760
  %v348 = vsub.f32 %v346, %v347
  %v349 = vand.u32 %v348, 4294901760
  %350 = vmatmul.f32.gmra.mxu0 %v349
  %v351 = vpop.f32.mrf.mxu0
  %v352 = vadd.f32 %v64, %v351
  %v353 = vand.u32 %v125, 4294901760
  %v354 = vsub.f32 %v125, %v353
  %v355 = vand.u32 %v354, 4294901760
  %v356 = vsub.f32 %v354, %v355
  %v357 = vand.u32 %v356, 4294901760
  %358 = vmatmul.f32.gmra.mxu0 %v357
  %v359 = vpop.f32.mrf.mxu0
  %v360 = vadd.f32 %v64, %v359
  %v361 = vand.u32 %v128, 4294901760
  %v362 = vsub.f32 %v128, %v361
  %v363 = vand.u32 %v362, 4294901760
  %v364 = vsub.f32 %v362, %v363
  %v365 = vand.u32 %v364, 4294901760
  %366 = vmatmul.f32.gmra.mxu0 %v365
  %v367 = vpop.f32.mrf.mxu0
  %v368 = vadd.f32 %v64, %v367
  %v369 = vand.u32 %v131, 4294901760
  %v370 = vsub.f32 %v131, %v369
  %v371 = vand.u32 %v370, 4294901760
  %v372 = vsub.f32 %v370, %v371
  %v373 = vand.u32 %v372, 4294901760
  %374 = vmatmul.f32.gmra.mxu0 %v373
  %v375 = vpop.f32.mrf.mxu0
  %v376 = vadd.f32 %v64, %v375
  %v377 = vand.u32 %v134, 4294901760
  %v378 = vsub.f32 %v134, %v377
  %v379 = vand.u32 %v378, 4294901760
  %v380 = vsub.f32 %v378, %v379
  %v381 = vand.u32 %v380, 4294901760
  %382 = vmatmul.f32.gmra.mxu0 %v381
  %v383 = vpop.f32.mrf.mxu0
  %v384 = vadd.f32 %v64, %v383
  %v385 = vand.u32 %v137, 4294901760
  %v386 = vsub.f32 %v137, %v385
  %v387 = vand.u32 %v386, 4294901760
  %v388 = vsub.f32 %v386, %v387
  %v389 = vand.u32 %v388, 4294901760
  %390 = vmatmul.f32.gmra.mxu0 %v389
  %v391 = vpop.f32.mrf.mxu0
  %v392 = vadd.f32 %v64, %v391
  %v393 = vand.u32 %v140, 4294901760
  %v394 = vsub.f32 %v140, %v393
  %v395 = vand.u32 %v394, 4294901760
  %v396 = vsub.f32 %v394, %v395
  %v397 = vand.u32 %v396, 4294901760
  %398 = vmatmul.f32.gmra.mxu0 %v397
  %v399 = vpop.f32.mrf.mxu0
  %v400 = vadd.f32 %v64, %v399
  %v401 = vand.u32 %v143, 4294901760
  %v402 = vsub.f32 %v143, %v401
  %v403 = vand.u32 %v402, 4294901760
  %v404 = vsub.f32 %v402, %v403
  %v405 = vand.u32 %v404, 4294901760
  %406 = vmatmul.f32.gmra.mxu0 %v405
  %v407 = vpop.f32.mrf.mxu0
  %v408 = vadd.f32 %v64, %v407
  %v409 = vand.u32 %v146, 4294901760
  %v410 = vsub.f32 %v146, %v409
  %v411 = vand.u32 %v410, 4294901760
  %v412 = vsub.f32 %v410, %v411
  %v413 = vand.u32 %v412, 4294901760
  %414 = vmatmul.f32.gmra.mxu0 %v413
  %v415 = vpop.f32.mrf.mxu0
  %v416 = vadd.f32 %v64, %v415
  %v417 = vand.u32 %v149, 4294901760
  %v418 = vsub.f32 %v149, %v417
  %v419 = vand.u32 %v418, 4294901760
  %v420 = vsub.f32 %v418, %v419
  %v421 = vand.u32 %v420, 4294901760
  %422 = vmatmul.f32.gmra.mxu0 %v421
  %v423 = vpop.f32.mrf.mxu0
  %v424 = vadd.f32 %v64, %v423
  %v425 = vand.u32 %v152, 4294901760
  %v426 = vsub.f32 %v152, %v425
  %v427 = vand.u32 %v426, 4294901760
  %v428 = vsub.f32 %v426, %v427
  %v429 = vand.u32 %v428, 4294901760
  %430 = vmatmul.f32.gmra.mxu0 %v429
  %v431 = vpop.f32.mrf.mxu0
  %v432 = vadd.f32 %v64, %v431
  %v433 = vand.u32 %v155, 4294901760
  %v434 = vsub.f32 %v155, %v433
  %v435 = vand.u32 %v434, 4294901760
  %v436 = vsub.f32 %v434, %v435
  %v437 = vand.u32 %v436, 4294901760
  %438 = vmatmul.f32.gmra.mxu0 %v437
  %v439 = vpop.f32.mrf.mxu0
  %v440 = vadd.f32 %v64, %v439
  %v441 = vand.u32 %v158, 4294901760
  %v442 = vsub.f32 %v158, %v441
  %v443 = vand.u32 %v442, 4294901760
  %v444 = vsub.f32 %v442, %v443
  %v445 = vand.u32 %v444, 4294901760
  %446 = vmatmul.f32.gmra.mxu0 %v445
  %v447 = vpop.f32.mrf.mxu0
  %v448 = vadd.f32 %v64, %v447
  %v449 = vand.u32 %v161, 4294901760
  %v450 = vsub.f32 %v161, %v449
  %v451 = vand.u32 %v450, 4294901760
  %v452 = vsub.f32 %v450, %v451
  %v453 = vand.u32 %v452, 4294901760
  %454 = vmatmul.f32.gmra.mxu0 %v453
  %v455 = vpop.f32.mrf.mxu0
  %v456 = vadd.f32 %v64, %v455
  %v457 = vand.u32 %v164, 4294901760
  %v458 = vsub.f32 %v164, %v457
  %v459 = vand.u32 %v458, 4294901760
  %v460 = vsub.f32 %v458, %v459
  %v461 = vand.u32 %v460, 4294901760
  %462 = vmatmul.f32.gmra.mxu0 %v461
  %v463 = vpop.f32.mrf.mxu0
  %v464 = vadd.f32 %v64, %v463
  %v465 = vand.u32 %v167, 4294901760
  %v466 = vsub.f32 %v167, %v465
  %v467 = vand.u32 %v466, 4294901760
  %v468 = vsub.f32 %v466, %v467
  %v469 = vand.u32 %v468, 4294901760
  %470 = vmatmul.f32.gmra.mxu0 %v469
  %v471 = vpop.f32.mrf.mxu0
  %v472 = vadd.f32 %v64, %v471
  %v473 = vand.u32 %v170, 4294901760
  %v474 = vsub.f32 %v170, %v473
  %v475 = vand.u32 %v474, 4294901760
  %v476 = vsub.f32 %v474, %v475
  %v477 = vand.u32 %v476, 4294901760
  %478 = vmatmul.f32.gmra.mxu0 %v477
  %v479 = vpop.f32.mrf.mxu0
  %v480 = vadd.f32 %v64, %v479
  %v481 = vand.u32 %v173, 4294901760
  %v482 = vsub.f32 %v173, %v481
  %v483 = vand.u32 %v482, 4294901760
  %v484 = vsub.f32 %v482, %v483
  %v485 = vand.u32 %v484, 4294901760
  %486 = vmatmul.f32.gmra.mxu0 %v485
  %v487 = vpop.f32.mrf.mxu0
  %v488 = vadd.f32 %v64, %v487
  %v489 = vand.u32 %v176, 4294901760
  %v490 = vsub.f32 %v176, %v489
  %v491 = vand.u32 %v490, 4294901760
  %v492 = vsub.f32 %v490, %v491
  %v493 = vand.u32 %v492, 4294901760
  %494 = vmatmul.f32.gmra.mxu0 %v493
  %v495 = vpop.f32.mrf.mxu0
  %v496 = vadd.f32 %v64, %v495
  %v497 = vand.u32 %v179, 4294901760
  %v498 = vsub.f32 %v179, %v497
  %v499 = vand.u32 %v498, 4294901760
  %v500 = vsub.f32 %v498, %v499
  %v501 = vand.u32 %v500, 4294901760
  %502 = vmatmul.f32.gmra.mxu0 %v501
  %v503 = vpop.f32.mrf.mxu0
  %v504 = vadd.f32 %v64, %v503
  %505 = vdwg.mxu0
  %506 = vmatpush.msra.mxu0 0.0
  %507 = vmatpush.msra.mxu0 0.0
  %508 = vmatpush.msra.mxu0 0.0
  %509 = vmatpush.msra.mxu0 0.0
  %510 = vmatpush.msra.mxu0 0.0
  %511 = vmatpush.msra.mxu0 0.0
  %512 = vmatpush.msra.mxu0 0.0
  %513 = vmatpush.msra.mxu0 0.0
  %514 = vmatpush.msra.mxu0 0.0
  %515 = vmatpush.msra.mxu0 0.0
  %516 = vmatpush.msra.mxu0 0.0
  %517 = vmatpush.msra.mxu0 0.0
  %v518 = vand.u32 %v61, 4294901760
  %v519 = vsub.f32 %v61, %v518
  %v520 = vand.u32 %v519, 4294901760
  %v521 = vsub.f32 %v519, %v520
  %v522 = vand.u32 %v521, 4294901760
  %523 = vmatpush.msra.mxu0 %v522
  %v524 = vand.u32 %v60, 4294901760
  %v525 = vsub.f32 %v60, %v524
  %v526 = vand.u32 %v525, 4294901760
  %v527 = vsub.f32 %v525, %v526
  %v528 = vand.u32 %v527, 4294901760
  %529 = vmatpush.msra.mxu0 %v528
  %v530 = vand.u32 %v59, 4294901760
  %v531 = vsub.f32 %v59, %v530
  %v532 = vand.u32 %v531, 4294901760
  %v533 = vsub.f32 %v531, %v532
  %v534 = vand.u32 %v533, 4294901760
  %535 = vmatpush.msra.mxu0 %v534
  %v536 = vand.u32 %v58, 4294901760
  %v537 = vsub.f32 %v58, %v536
  %v538 = vand.u32 %v537, 4294901760
  %v539 = vsub.f32 %v537, %v538
  %v540 = vand.u32 %v539, 4294901760
  %541 = vmatpush.msra.mxu0 %v540
  %v542 = vand.u32 %v68, 4294901760
  %543 = vmatmul.f32.gmra.mxu0 %v542
  %v544 = vpop.f32.mrf.mxu0
  %v545 = vadd.f32 %v208, %v544
  %v546 = vand.u32 %v71, 4294901760
  %547 = vmatmul.f32.gmra.mxu0 %v546
  %v548 = vpop.f32.mrf.mxu0
  %v549 = vadd.f32 %v216, %v548
  %v550 = vand.u32 %v74, 4294901760
  %551 = vmatmul.f32.gmra.mxu0 %v550
  %v552 = vpop.f32.mrf.mxu0
  %v553 = vadd.f32 %v224, %v552
  %v554 = vand.u32 %v77, 4294901760
  %555 = vmatmul.f32.gmra.mxu0 %v554
  %v556 = vpop.f32.mrf.mxu0
  %v557 = vadd.f32 %v232, %v556
  %v558 = vand.u32 %v80, 4294901760
  %559 = vmatmul.f32.gmra.mxu0 %v558
  %v560 = vpop.f32.mrf.mxu0
  %v561 = vadd.f32 %v240, %v560
  %v562 = vand.u32 %v83, 4294901760
  %563 = vmatmul.f32.gmra.mxu0 %v562
  %v564 = vpop.f32.mrf.mxu0
  %v565 = vadd.f32 %v248, %v564
  %v566 = vand.u32 %v86, 4294901760
  %567 = vmatmul.f32.gmra.mxu0 %v566
  %v568 = vpop.f32.mrf.mxu0
  %v569 = vadd.f32 %v256, %v568
  %v570 = vand.u32 %v89, 4294901760
  %571 = vmatmul.f32.gmra.mxu0 %v570
  %v572 = vpop.f32.mrf.mxu0
  %v573 = vadd.f32 %v264, %v572
  %v574 = vand.u32 %v92, 4294901760
  %575 = vmatmul.f32.gmra.mxu0 %v574
  %v576 = vpop.f32.mrf.mxu0
  %v577 = vadd.f32 %v272, %v576
  %v578 = vand.u32 %v95, 4294901760
  %579 = vmatmul.f32.gmra.mxu0 %v578
  %v580 = vpop.f32.mrf.mxu0
  %v581 = vadd.f32 %v280, %v580
  %v582 = vand.u32 %v98, 4294901760
  %583 = vmatmul.f32.gmra.mxu0 %v582
  %v584 = vpop.f32.mrf.mxu0
  %v585 = vadd.f32 %v288, %v584
  %v586 = vand.u32 %v101, 4294901760
  %587 = vmatmul.f32.gmra.mxu0 %v586
  %v588 = vpop.f32.mrf.mxu0
  %v589 = vadd.f32 %v296, %v588
  %v590 = vand.u32 %v104, 4294901760
  %591 = vmatmul.f32.gmra.mxu0 %v590
  %v592 = vpop.f32.mrf.mxu0
  %v593 = vadd.f32 %v304, %v592
  %v594 = vand.u32 %v107, 4294901760
  %595 = vmatmul.f32.gmra.mxu0 %v594
  %v596 = vpop.f32.mrf.mxu0
  %v597 = vadd.f32 %v312, %v596
  %v598 = vand.u32 %v110, 4294901760
  %599 = vmatmul.f32.gmra.mxu0 %v598
  %v600 = vpop.f32.mrf.mxu0
  %v601 = vadd.f32 %v320, %v600
  %v602 = vand.u32 %v113, 4294901760
  %603 = vmatmul.f32.gmra.mxu0 %v602
  %v604 = vpop.f32.mrf.mxu0
  %v605 = vadd.f32 %v328, %v604
  %v606 = vand.u32 %v116, 4294901760
  %607 = vmatmul.f32.gmra.mxu0 %v606
  %v608 = vpop.f32.mrf.mxu0
  %v609 = vadd.f32 %v336, %v608
  %v610 = vand.u32 %v119, 4294901760
  %611 = vmatmul.f32.gmra.mxu0 %v610
  %v612 = vpop.f32.mrf.mxu0
  %v613 = vadd.f32 %v344, %v612
  %v614 = vand.u32 %v122, 4294901760
  %615 = vmatmul.f32.gmra.mxu0 %v614
  %v616 = vpop.f32.mrf.mxu0
  %v617 = vadd.f32 %v352, %v616
  %v618 = vand.u32 %v125, 4294901760
  %619 = vmatmul.f32.gmra.mxu0 %v618
  %v620 = vpop.f32.mrf.mxu0
  %v621 = vadd.f32 %v360, %v620
  %v622 = vand.u32 %v128, 4294901760
  %623 = vmatmul.f32.gmra.mxu0 %v622
  %v624 = vpop.f32.mrf.mxu0
  %v625 = vadd.f32 %v368, %v624
  %v626 = vand.u32 %v131, 4294901760
  %627 = vmatmul.f32.gmra.mxu0 %v626
  %v628 = vpop.f32.mrf.mxu0
  %v629 = vadd.f32 %v376, %v628
  %v630 = vand.u32 %v134, 4294901760
  %631 = vmatmul.f32.gmra.mxu0 %v630
  %v632 = vpop.f32.mrf.mxu0
  %v633 = vadd.f32 %v384, %v632
  %v634 = vand.u32 %v137, 4294901760
  %635 = vmatmul.f32.gmra.mxu0 %v634
  %v636 = vpop.f32.mrf.mxu0
  %v637 = vadd.f32 %v392, %v636
  %v638 = vand.u32 %v140, 4294901760
  %639 = vmatmul.f32.gmra.mxu0 %v638
  %v640 = vpop.f32.mrf.mxu0
  %v641 = vadd.f32 %v400, %v640
  %v642 = vand.u32 %v143, 4294901760
  %643 = vmatmul.f32.gmra.mxu0 %v642
  %v644 = vpop.f32.mrf.mxu0
  %v645 = vadd.f32 %v408, %v644
  %v646 = vand.u32 %v146, 4294901760
  %647 = vmatmul.f32.gmra.mxu0 %v646
  %v648 = vpop.f32.mrf.mxu0
  %v649 = vadd.f32 %v416, %v648
  %v650 = vand.u32 %v149, 4294901760
  %651 = vmatmul.f32.gmra.mxu0 %v650
  %v652 = vpop.f32.mrf.mxu0
  %v653 = vadd.f32 %v424, %v652
  %v654 = vand.u32 %v152, 4294901760
  %655 = vmatmul.f32.gmra.mxu0 %v654
  %v656 = vpop.f32.mrf.mxu0
  %v657 = vadd.f32 %v432, %v656
  %v658 = vand.u32 %v155, 4294901760
  %659 = vmatmul.f32.gmra.mxu0 %v658
  %v660 = vpop.f32.mrf.mxu0
  %v661 = vadd.f32 %v440, %v660
  %v662 = vand.u32 %v158, 4294901760
  %663 = vmatmul.f32.gmra.mxu0 %v662
  %v664 = vpop.f32.mrf.mxu0
  %v665 = vadd.f32 %v448, %v664
  %v666 = vand.u32 %v161, 4294901760
  %667 = vmatmul.f32.gmra.mxu0 %v666
  %v668 = vpop.f32.mrf.mxu0
  %v669 = vadd.f32 %v456, %v668
  %v670 = vand.u32 %v164, 4294901760
  %671 = vmatmul.f32.gmra.mxu0 %v670
  %v672 = vpop.f32.mrf.mxu0
  %v673 = vadd.f32 %v464, %v672
  %v674 = vand.u32 %v167, 4294901760
  %675 = vmatmul.f32.gmra.mxu0 %v674
  %v676 = vpop.f32.mrf.mxu0
  %v677 = vadd.f32 %v472, %v676
  %v678 = vand.u32 %v170, 4294901760
  %679 = vmatmul.f32.gmra.mxu0 %v678
  %v680 = vpop.f32.mrf.mxu0
  %v681 = vadd.f32 %v480, %v680
  %v682 = vand.u32 %v173, 4294901760
  %683 = vmatmul.f32.gmra.mxu0 %v682
  %v684 = vpop.f32.mrf.mxu0
  %v685 = vadd.f32 %v488, %v684
  %v686 = vand.u32 %v176, 4294901760
  %687 = vmatmul.f32.gmra.mxu0 %v686
  %v688 = vpop.f32.mrf.mxu0
  %v689 = vadd.f32 %v496, %v688
  %v690 = vand.u32 %v179, 4294901760
  %691 = vmatmul.f32.gmra.mxu0 %v690
  %v692 = vpop.f32.mrf.mxu0
  %v693 = vadd.f32 %v504, %v692
  %694 = vdwg.mxu0
  %695 = vmatpush.msra.mxu0 0.0
  %696 = vmatpush.msra.mxu0 0.0
  %697 = vmatpush.msra.mxu0 0.0
  %698 = vmatpush.msra.mxu0 0.0
  %699 = vmatpush.msra.mxu0 0.0
  %700 = vmatpush.msra.mxu0 0.0
  %701 = vmatpush.msra.mxu0 0.0
  %702 = vmatpush.msra.mxu0 0.0
  %703 = vmatpush.msra.mxu0 0.0
  %704 = vmatpush.msra.mxu0 0.0
  %705 = vmatpush.msra.mxu0 0.0
  %706 = vmatpush.msra.mxu0 0.0
  %v707 = vand.u32 %v61, 4294901760
  %v708 = vsub.f32 %v61, %v707
  %709 = vmatpush.msra.mxu0 %v708
  %v710 = vand.u32 %v60, 4294901760
  %v711 = vsub.f32 %v60, %v710
  %712 = vmatpush.msra.mxu0 %v711
  %v713 = vand.u32 %v59, 4294901760
  %v714 = vsub.f32 %v59, %v713
  %715 = vmatpush.msra.mxu0 %v714
  %v716 = vand.u32 %v58, 4294901760
  %v717 = vsub.f32 %v58, %v716
  %718 = vmatpush.msra.mxu0 %v717
  %v719 = vand.u32 %v68, 4294901760
  %v720 = vsub.f32 %v68, %v719
  %721 = vmatmul.f32.gmra.mxu0 %v720
  %v722 = vpop.f32.mrf.mxu0
  %v723 = vadd.f32 %v545, %v722
  %v724 = vand.u32 %v71, 4294901760
  %v725 = vsub.f32 %v71, %v724
  %726 = vmatmul.f32.gmra.mxu0 %v725
  %v727 = vpop.f32.mrf.mxu0
  %v728 = vadd.f32 %v549, %v727
  %v729 = vand.u32 %v74, 4294901760
  %v730 = vsub.f32 %v74, %v729
  %731 = vmatmul.f32.gmra.mxu0 %v730
  %v732 = vpop.f32.mrf.mxu0
  %v733 = vadd.f32 %v553, %v732
  %v734 = vand.u32 %v77, 4294901760
  %v735 = vsub.f32 %v77, %v734
  %736 = vmatmul.f32.gmra.mxu0 %v735
  %v737 = vpop.f32.mrf.mxu0
  %v738 = vadd.f32 %v557, %v737
  %v739 = vand.u32 %v80, 4294901760
  %v740 = vsub.f32 %v80, %v739
  %741 = vmatmul.f32.gmra.mxu0 %v740
  %v742 = vpop.f32.mrf.mxu0
  %v743 = vadd.f32 %v561, %v742
  %v744 = vand.u32 %v83, 4294901760
  %v745 = vsub.f32 %v83, %v744
  %746 = vmatmul.f32.gmra.mxu0 %v745
  %v747 = vpop.f32.mrf.mxu0
  %v748 = vadd.f32 %v565, %v747
  %v749 = vand.u32 %v86, 4294901760
  %v750 = vsub.f32 %v86, %v749
  %751 = vmatmul.f32.gmra.mxu0 %v750
  %v752 = vpop.f32.mrf.mxu0
  %v753 = vadd.f32 %v569, %v752
  %v754 = vand.u32 %v89, 4294901760
  %v755 = vsub.f32 %v89, %v754
  %756 = vmatmul.f32.gmra.mxu0 %v755
  %v757 = vpop.f32.mrf.mxu0
  %v758 = vadd.f32 %v573, %v757
  %v759 = vand.u32 %v92, 4294901760
  %v760 = vsub.f32 %v92, %v759
  %761 = vmatmul.f32.gmra.mxu0 %v760
  %v762 = vpop.f32.mrf.mxu0
  %v763 = vadd.f32 %v577, %v762
  %v764 = vand.u32 %v95, 4294901760
  %v765 = vsub.f32 %v95, %v764
  %766 = vmatmul.f32.gmra.mxu0 %v765
  %v767 = vpop.f32.mrf.mxu0
  %v768 = vadd.f32 %v581, %v767
  %v769 = vand.u32 %v98, 4294901760
  %v770 = vsub.f32 %v98, %v769
  %771 = vmatmul.f32.gmra.mxu0 %v770
  %v772 = vpop.f32.mrf.mxu0
  %v773 = vadd.f32 %v585, %v772
  %v774 = vand.u32 %v101, 4294901760
  %v775 = vsub.f32 %v101, %v774
  %776 = vmatmul.f32.gmra.mxu0 %v775
  %v777 = vpop.f32.mrf.mxu0
  %v778 = vadd.f32 %v589, %v777
  %v779 = vand.u32 %v104, 4294901760
  %v780 = vsub.f32 %v104, %v779
  %781 = vmatmul.f32.gmra.mxu0 %v780
  %v782 = vpop.f32.mrf.mxu0
  %v783 = vadd.f32 %v593, %v782
  %v784 = vand.u32 %v107, 4294901760
  %v785 = vsub.f32 %v107, %v784
  %786 = vmatmul.f32.gmra.mxu0 %v785
  %v787 = vpop.f32.mrf.mxu0
  %v788 = vadd.f32 %v597, %v787
  %v789 = vand.u32 %v110, 4294901760
  %v790 = vsub.f32 %v110, %v789
  %791 = vmatmul.f32.gmra.mxu0 %v790
  %v792 = vpop.f32.mrf.mxu0
  %v793 = vadd.f32 %v601, %v792
  %v794 = vand.u32 %v113, 4294901760
  %v795 = vsub.f32 %v113, %v794
  %796 = vmatmul.f32.gmra.mxu0 %v795
  %v797 = vpop.f32.mrf.mxu0
  %v798 = vadd.f32 %v605, %v797
  %v799 = vand.u32 %v116, 4294901760
  %v800 = vsub.f32 %v116, %v799
  %801 = vmatmul.f32.gmra.mxu0 %v800
  %v802 = vpop.f32.mrf.mxu0
  %v803 = vadd.f32 %v609, %v802
  %v804 = vand.u32 %v119, 4294901760
  %v805 = vsub.f32 %v119, %v804
  %806 = vmatmul.f32.gmra.mxu0 %v805
  %v807 = vpop.f32.mrf.mxu0
  %v808 = vadd.f32 %v613, %v807
  %v809 = vand.u32 %v122, 4294901760
  %v810 = vsub.f32 %v122, %v809
  %811 = vmatmul.f32.gmra.mxu0 %v810
  %v812 = vpop.f32.mrf.mxu0
  %v813 = vadd.f32 %v617, %v812
  %v814 = vand.u32 %v125, 4294901760
  %v815 = vsub.f32 %v125, %v814
  %816 = vmatmul.f32.gmra.mxu0 %v815
  %v817 = vpop.f32.mrf.mxu0
  %v818 = vadd.f32 %v621, %v817
  %v819 = vand.u32 %v128, 4294901760
  %v820 = vsub.f32 %v128, %v819
  %821 = vmatmul.f32.gmra.mxu0 %v820
  %v822 = vpop.f32.mrf.mxu0
  %v823 = vadd.f32 %v625, %v822
  %v824 = vand.u32 %v131, 4294901760
  %v825 = vsub.f32 %v131, %v824
  %826 = vmatmul.f32.gmra.mxu0 %v825
  %v827 = vpop.f32.mrf.mxu0
  %v828 = vadd.f32 %v629, %v827
  %v829 = vand.u32 %v134, 4294901760
  %v830 = vsub.f32 %v134, %v829
  %831 = vmatmul.f32.gmra.mxu0 %v830
  %v832 = vpop.f32.mrf.mxu0
  %v833 = vadd.f32 %v633, %v832
  %v834 = vand.u32 %v137, 4294901760
  %v835 = vsub.f32 %v137, %v834
  %836 = vmatmul.f32.gmra.mxu0 %v835
  %v837 = vpop.f32.mrf.mxu0
  %v838 = vadd.f32 %v637, %v837
  %v839 = vand.u32 %v140, 4294901760
  %v840 = vsub.f32 %v140, %v839
  %841 = vmatmul.f32.gmra.mxu0 %v840
  %v842 = vpop.f32.mrf.mxu0
  %v843 = vadd.f32 %v641, %v842
  %v844 = vand.u32 %v143, 4294901760
  %v845 = vsub.f32 %v143, %v844
  %846 = vmatmul.f32.gmra.mxu0 %v845
  %v847 = vpop.f32.mrf.mxu0
  %v848 = vadd.f32 %v645, %v847
  %v849 = vand.u32 %v146, 4294901760
  %v850 = vsub.f32 %v146, %v849
  %851 = vmatmul.f32.gmra.mxu0 %v850
  %v852 = vpop.f32.mrf.mxu0
  %v853 = vadd.f32 %v649, %v852
  %v854 = vand.u32 %v149, 4294901760
  %v855 = vsub.f32 %v149, %v854
  %856 = vmatmul.f32.gmra.mxu0 %v855
  %v857 = vpop.f32.mrf.mxu0
  %v858 = vadd.f32 %v653, %v857
  %v859 = vand.u32 %v152, 4294901760
  %v860 = vsub.f32 %v152, %v859
  %861 = vmatmul.f32.gmra.mxu0 %v860
  %v862 = vpop.f32.mrf.mxu0
  %v863 = vadd.f32 %v657, %v862
  %v864 = vand.u32 %v155, 4294901760
  %v865 = vsub.f32 %v155, %v864
  %866 = vmatmul.f32.gmra.mxu0 %v865
  %v867 = vpop.f32.mrf.mxu0
  %v868 = vadd.f32 %v661, %v867
  %v869 = vand.u32 %v158, 4294901760
  %v870 = vsub.f32 %v158, %v869
  %871 = vmatmul.f32.gmra.mxu0 %v870
  %v872 = vpop.f32.mrf.mxu0
  %v873 = vadd.f32 %v665, %v872
  %v874 = vand.u32 %v161, 4294901760
  %v875 = vsub.f32 %v161, %v874
  %876 = vmatmul.f32.gmra.mxu0 %v875
  %v877 = vpop.f32.mrf.mxu0
  %v878 = vadd.f32 %v669, %v877
  %v879 = vand.u32 %v164, 4294901760
  %v880 = vsub.f32 %v164, %v879
  %881 = vmatmul.f32.gmra.mxu0 %v880
  %v882 = vpop.f32.mrf.mxu0
  %v883 = vadd.f32 %v673, %v882
  %v884 = vand.u32 %v167, 4294901760
  %v885 = vsub.f32 %v167, %v884
  %886 = vmatmul.f32.gmra.mxu0 %v885
  %v887 = vpop.f32.mrf.mxu0
  %v888 = vadd.f32 %v677, %v887
  %v889 = vand.u32 %v170, 4294901760
  %v890 = vsub.f32 %v170, %v889
  %891 = vmatmul.f32.gmra.mxu0 %v890
  %v892 = vpop.f32.mrf.mxu0
  %v893 = vadd.f32 %v681, %v892
  %v894 = vand.u32 %v173, 4294901760
  %v895 = vsub.f32 %v173, %v894
  %896 = vmatmul.f32.gmra.mxu0 %v895
  %v897 = vpop.f32.mrf.mxu0
  %v898 = vadd.f32 %v685, %v897
  %v899 = vand.u32 %v176, 4294901760
  %v900 = vsub.f32 %v176, %v899
  %901 = vmatmul.f32.gmra.mxu0 %v900
  %v902 = vpop.f32.mrf.mxu0
  %v903 = vadd.f32 %v689, %v902
  %v904 = vand.u32 %v179, 4294901760
  %v905 = vsub.f32 %v179, %v904
  %906 = vmatmul.f32.gmra.mxu0 %v905
  %v907 = vpop.f32.mrf.mxu0
  %v908 = vadd.f32 %v693, %v907
  %909 = vdwg.mxu0
  %910 = vmatpush.msra.mxu0 0.0
  %911 = vmatpush.msra.mxu0 0.0
  %912 = vmatpush.msra.mxu0 0.0
  %913 = vmatpush.msra.mxu0 0.0
  %914 = vmatpush.msra.mxu0 0.0
  %915 = vmatpush.msra.mxu0 0.0
  %916 = vmatpush.msra.mxu0 0.0
  %917 = vmatpush.msra.mxu0 0.0
  %918 = vmatpush.msra.mxu0 0.0
  %919 = vmatpush.msra.mxu0 0.0
  %920 = vmatpush.msra.mxu0 0.0
  %921 = vmatpush.msra.mxu0 0.0
  %v922 = vand.u32 %v61, 4294901760
  %923 = vmatpush.msra.mxu0 %v922
  %v924 = vand.u32 %v60, 4294901760
  %925 = vmatpush.msra.mxu0 %v924
  %v926 = vand.u32 %v59, 4294901760
  %927 = vmatpush.msra.mxu0 %v926
  %v928 = vand.u32 %v58, 4294901760
  %929 = vmatpush.msra.mxu0 %v928
  %v930 = vand.u32 %v68, 4294901760
  %v931 = vsub.f32 %v68, %v930
  %v932 = vand.u32 %v931, 4294901760
  %933 = vmatmul.f32.gmra.mxu0 %v932
  %v934 = vpop.f32.mrf.mxu0
  %v935 = vadd.f32 %v723, %v934
  %v936 = vand.u32 %v71, 4294901760
  %v937 = vsub.f32 %v71, %v936
  %v938 = vand.u32 %v937, 4294901760
  %939 = vmatmul.f32.gmra.mxu0 %v938
  %v940 = vpop.f32.mrf.mxu0
  %v941 = vadd.f32 %v728, %v940
  %v942 = vand.u32 %v74, 4294901760
  %v943 = vsub.f32 %v74, %v942
  %v944 = vand.u32 %v943, 4294901760
  %945 = vmatmul.f32.gmra.mxu0 %v944
  %v946 = vpop.f32.mrf.mxu0
  %v947 = vadd.f32 %v733, %v946
  %v948 = vand.u32 %v77, 4294901760
  %v949 = vsub.f32 %v77, %v948
  %v950 = vand.u32 %v949, 4294901760
  %951 = vmatmul.f32.gmra.mxu0 %v950
  %v952 = vpop.f32.mrf.mxu0
  %v953 = vadd.f32 %v738, %v952
  %v954 = vand.u32 %v80, 4294901760
  %v955 = vsub.f32 %v80, %v954
  %v956 = vand.u32 %v955, 4294901760
  %957 = vmatmul.f32.gmra.mxu0 %v956
  %v958 = vpop.f32.mrf.mxu0
  %v959 = vadd.f32 %v743, %v958
  %v960 = vand.u32 %v83, 4294901760
  %v961 = vsub.f32 %v83, %v960
  %v962 = vand.u32 %v961, 4294901760
  %963 = vmatmul.f32.gmra.mxu0 %v962
  %v964 = vpop.f32.mrf.mxu0
  %v965 = vadd.f32 %v748, %v964
  %v966 = vand.u32 %v86, 4294901760
  %v967 = vsub.f32 %v86, %v966
  %v968 = vand.u32 %v967, 4294901760
  %969 = vmatmul.f32.gmra.mxu0 %v968
  %v970 = vpop.f32.mrf.mxu0
  %v971 = vadd.f32 %v753, %v970
  %v972 = vand.u32 %v89, 4294901760
  %v973 = vsub.f32 %v89, %v972
  %v974 = vand.u32 %v973, 4294901760
  %975 = vmatmul.f32.gmra.mxu0 %v974
  %v976 = vpop.f32.mrf.mxu0
  %v977 = vadd.f32 %v758, %v976
  %v978 = vand.u32 %v92, 4294901760
  %v979 = vsub.f32 %v92, %v978
  %v980 = vand.u32 %v979, 4294901760
  %981 = vmatmul.f32.gmra.mxu0 %v980
  %v982 = vpop.f32.mrf.mxu0
  %v983 = vadd.f32 %v763, %v982
  %v984 = vand.u32 %v95, 4294901760
  %v985 = vsub.f32 %v95, %v984
  %v986 = vand.u32 %v985, 4294901760
  %987 = vmatmul.f32.gmra.mxu0 %v986
  %v988 = vpop.f32.mrf.mxu0
  %v989 = vadd.f32 %v768, %v988
  %v990 = vand.u32 %v98, 4294901760
  %v991 = vsub.f32 %v98, %v990
  %v992 = vand.u32 %v991, 4294901760
  %993 = vmatmul.f32.gmra.mxu0 %v992
  %v994 = vpop.f32.mrf.mxu0
  %v995 = vadd.f32 %v773, %v994
  %v996 = vand.u32 %v101, 4294901760
  %v997 = vsub.f32 %v101, %v996
  %v998 = vand.u32 %v997, 4294901760
  %999 = vmatmul.f32.gmra.mxu0 %v998
  %v1000 = vpop.f32.mrf.mxu0
  %v1001 = vadd.f32 %v778, %v1000
  %v1002 = vand.u32 %v104, 4294901760
  %v1003 = vsub.f32 %v104, %v1002
  %v1004 = vand.u32 %v1003, 4294901760
  %1005 = vmatmul.f32.gmra.mxu0 %v1004
  %v1006 = vpop.f32.mrf.mxu0
  %v1007 = vadd.f32 %v783, %v1006
  %v1008 = vand.u32 %v107, 4294901760
  %v1009 = vsub.f32 %v107, %v1008
  %v1010 = vand.u32 %v1009, 4294901760
  %1011 = vmatmul.f32.gmra.mxu0 %v1010
  %v1012 = vpop.f32.mrf.mxu0
  %v1013 = vadd.f32 %v788, %v1012
  %v1014 = vand.u32 %v110, 4294901760
  %v1015 = vsub.f32 %v110, %v1014
  %v1016 = vand.u32 %v1015, 4294901760
  %1017 = vmatmul.f32.gmra.mxu0 %v1016
  %v1018 = vpop.f32.mrf.mxu0
  %v1019 = vadd.f32 %v793, %v1018
  %v1020 = vand.u32 %v113, 4294901760
  %v1021 = vsub.f32 %v113, %v1020
  %v1022 = vand.u32 %v1021, 4294901760
  %1023 = vmatmul.f32.gmra.mxu0 %v1022
  %v1024 = vpop.f32.mrf.mxu0
  %v1025 = vadd.f32 %v798, %v1024
  %v1026 = vand.u32 %v116, 4294901760
  %v1027 = vsub.f32 %v116, %v1026
  %v1028 = vand.u32 %v1027, 4294901760
  %1029 = vmatmul.f32.gmra.mxu0 %v1028
  %v1030 = vpop.f32.mrf.mxu0
  %v1031 = vadd.f32 %v803, %v1030
  %v1032 = vand.u32 %v119, 4294901760
  %v1033 = vsub.f32 %v119, %v1032
  %v1034 = vand.u32 %v1033, 4294901760
  %1035 = vmatmul.f32.gmra.mxu0 %v1034
  %v1036 = vpop.f32.mrf.mxu0
  %v1037 = vadd.f32 %v808, %v1036
  %v1038 = vand.u32 %v122, 4294901760
  %v1039 = vsub.f32 %v122, %v1038
  %v1040 = vand.u32 %v1039, 4294901760
  %1041 = vmatmul.f32.gmra.mxu0 %v1040
  %v1042 = vpop.f32.mrf.mxu0
  %v1043 = vadd.f32 %v813, %v1042
  %v1044 = vand.u32 %v125, 4294901760
  %v1045 = vsub.f32 %v125, %v1044
  %v1046 = vand.u32 %v1045, 4294901760
  %1047 = vmatmul.f32.gmra.mxu0 %v1046
  %v1048 = vpop.f32.mrf.mxu0
  %v1049 = vadd.f32 %v818, %v1048
  %v1050 = vand.u32 %v128, 4294901760
  %v1051 = vsub.f32 %v128, %v1050
  %v1052 = vand.u32 %v1051, 4294901760
  %1053 = vmatmul.f32.gmra.mxu0 %v1052
  %v1054 = vpop.f32.mrf.mxu0
  %v1055 = vadd.f32 %v823, %v1054
  %v1056 = vand.u32 %v131, 4294901760
  %v1057 = vsub.f32 %v131, %v1056
  %v1058 = vand.u32 %v1057, 4294901760
  %1059 = vmatmul.f32.gmra.mxu0 %v1058
  %v1060 = vpop.f32.mrf.mxu0
  %v1061 = vadd.f32 %v828, %v1060
  %v1062 = vand.u32 %v134, 4294901760
  %v1063 = vsub.f32 %v134, %v1062
  %v1064 = vand.u32 %v1063, 4294901760
  %1065 = vmatmul.f32.gmra.mxu0 %v1064
  %v1066 = vpop.f32.mrf.mxu0
  %v1067 = vadd.f32 %v833, %v1066
  %v1068 = vand.u32 %v137, 4294901760
  %v1069 = vsub.f32 %v137, %v1068
  %v1070 = vand.u32 %v1069, 4294901760
  %1071 = vmatmul.f32.gmra.mxu0 %v1070
  %v1072 = vpop.f32.mrf.mxu0
  %v1073 = vadd.f32 %v838, %v1072
  %v1074 = vand.u32 %v140, 4294901760
  %v1075 = vsub.f32 %v140, %v1074
  %v1076 = vand.u32 %v1075, 4294901760
  %1077 = vmatmul.f32.gmra.mxu0 %v1076
  %v1078 = vpop.f32.mrf.mxu0
  %v1079 = vadd.f32 %v843, %v1078
  %v1080 = vand.u32 %v143, 4294901760
  %v1081 = vsub.f32 %v143, %v1080
  %v1082 = vand.u32 %v1081, 4294901760
  %1083 = vmatmul.f32.gmra.mxu0 %v1082
  %v1084 = vpop.f32.mrf.mxu0
  %v1085 = vadd.f32 %v848, %v1084
  %v1086 = vand.u32 %v146, 4294901760
  %v1087 = vsub.f32 %v146, %v1086
  %v1088 = vand.u32 %v1087, 4294901760
  %1089 = vmatmul.f32.gmra.mxu0 %v1088
  %v1090 = vpop.f32.mrf.mxu0
  %v1091 = vadd.f32 %v853, %v1090
  %v1092 = vand.u32 %v149, 4294901760
  %v1093 = vsub.f32 %v149, %v1092
  %v1094 = vand.u32 %v1093, 4294901760
  %1095 = vmatmul.f32.gmra.mxu0 %v1094
  %v1096 = vpop.f32.mrf.mxu0
  %v1097 = vadd.f32 %v858, %v1096
  %v1098 = vand.u32 %v152, 4294901760
  %v1099 = vsub.f32 %v152, %v1098
  %v1100 = vand.u32 %v1099, 4294901760
  %1101 = vmatmul.f32.gmra.mxu0 %v1100
  %v1102 = vpop.f32.mrf.mxu0
  %v1103 = vadd.f32 %v863, %v1102
  %v1104 = vand.u32 %v155, 4294901760
  %v1105 = vsub.f32 %v155, %v1104
  %v1106 = vand.u32 %v1105, 4294901760
  %1107 = vmatmul.f32.gmra.mxu0 %v1106
  %v1108 = vpop.f32.mrf.mxu0
  %v1109 = vadd.f32 %v868, %v1108
  %v1110 = vand.u32 %v158, 4294901760
  %v1111 = vsub.f32 %v158, %v1110
  %v1112 = vand.u32 %v1111, 4294901760
  %1113 = vmatmul.f32.gmra.mxu0 %v1112
  %v1114 = vpop.f32.mrf.mxu0
  %v1115 = vadd.f32 %v873, %v1114
  %v1116 = vand.u32 %v161, 4294901760
  %v1117 = vsub.f32 %v161, %v1116
  %v1118 = vand.u32 %v1117, 4294901760
  %1119 = vmatmul.f32.gmra.mxu0 %v1118
  %v1120 = vpop.f32.mrf.mxu0
  %v1121 = vadd.f32 %v878, %v1120
  %v1122 = vand.u32 %v164, 4294901760
  %v1123 = vsub.f32 %v164, %v1122
  %v1124 = vand.u32 %v1123, 4294901760
  %1125 = vmatmul.f32.gmra.mxu0 %v1124
  %v1126 = vpop.f32.mrf.mxu0
  %v1127 = vadd.f32 %v883, %v1126
  %v1128 = vand.u32 %v167, 4294901760
  %v1129 = vsub.f32 %v167, %v1128
  %v1130 = vand.u32 %v1129, 4294901760
  %1131 = vmatmul.f32.gmra.mxu0 %v1130
  %v1132 = vpop.f32.mrf.mxu0
  %v1133 = vadd.f32 %v888, %v1132
  %v1134 = vand.u32 %v170, 4294901760
  %v1135 = vsub.f32 %v170, %v1134
  %v1136 = vand.u32 %v1135, 4294901760
  %1137 = vmatmul.f32.gmra.mxu0 %v1136
  %v1138 = vpop.f32.mrf.mxu0
  %v1139 = vadd.f32 %v893, %v1138
  %v1140 = vand.u32 %v173, 4294901760
  %v1141 = vsub.f32 %v173, %v1140
  %v1142 = vand.u32 %v1141, 4294901760
  %1143 = vmatmul.f32.gmra.mxu0 %v1142
  %v1144 = vpop.f32.mrf.mxu0
  %v1145 = vadd.f32 %v898, %v1144
  %v1146 = vand.u32 %v176, 4294901760
  %v1147 = vsub.f32 %v176, %v1146
  %v1148 = vand.u32 %v1147, 4294901760
  %1149 = vmatmul.f32.gmra.mxu0 %v1148
  %v1150 = vpop.f32.mrf.mxu0
  %v1151 = vadd.f32 %v903, %v1150
  %v1152 = vand.u32 %v179, 4294901760
  %v1153 = vsub.f32 %v179, %v1152
  %v1154 = vand.u32 %v1153, 4294901760
  %1155 = vmatmul.f32.gmra.mxu0 %v1154
  %v1156 = vpop.f32.mrf.mxu0
  %v1157 = vadd.f32 %v908, %v1156
  %1158 = vdwg.mxu0
  %1159 = vmatpush.msra.mxu0 0.0
  %1160 = vmatpush.msra.mxu0 0.0
  %1161 = vmatpush.msra.mxu0 0.0
  %1162 = vmatpush.msra.mxu0 0.0
  %1163 = vmatpush.msra.mxu0 0.0
  %1164 = vmatpush.msra.mxu0 0.0
  %1165 = vmatpush.msra.mxu0 0.0
  %1166 = vmatpush.msra.mxu0 0.0
  %1167 = vmatpush.msra.mxu0 0.0
  %1168 = vmatpush.msra.mxu0 0.0
  %1169 = vmatpush.msra.mxu0 0.0
  %1170 = vmatpush.msra.mxu0 0.0
  %v1171 = vand.u32 %v61, 4294901760
  %v1172 = vsub.f32 %v61, %v1171
  %v1173 = vand.u32 %v1172, 4294901760
  %1174 = vmatpush.msra.mxu0 %v1173
  %v1175 = vand.u32 %v60, 4294901760
  %v1176 = vsub.f32 %v60, %v1175
  %v1177 = vand.u32 %v1176, 4294901760
  %1178 = vmatpush.msra.mxu0 %v1177
  %v1179 = vand.u32 %v59, 4294901760
  %v1180 = vsub.f32 %v59, %v1179
  %v1181 = vand.u32 %v1180, 4294901760
  %1182 = vmatpush.msra.mxu0 %v1181
  %v1183 = vand.u32 %v58, 4294901760
  %v1184 = vsub.f32 %v58, %v1183
  %v1185 = vand.u32 %v1184, 4294901760
  %1186 = vmatpush.msra.mxu0 %v1185
  %v1187 = vand.u32 %v68, 4294901760
  %1188 = vmatmul.f32.gmra.mxu0 %v1187
  %v1189 = vpop.f32.mrf.mxu0
  %v1190 = vadd.f32 %v935, %v1189
  %v1191 = vand.u32 %v71, 4294901760
  %1192 = vmatmul.f32.gmra.mxu0 %v1191
  %v1193 = vpop.f32.mrf.mxu0
  %v1194 = vadd.f32 %v941, %v1193
  %v1195 = vand.u32 %v74, 4294901760
  %1196 = vmatmul.f32.gmra.mxu0 %v1195
  %v1197 = vpop.f32.mrf.mxu0
  %v1198 = vadd.f32 %v947, %v1197
  %v1199 = vand.u32 %v77, 4294901760
  %1200 = vmatmul.f32.gmra.mxu0 %v1199
  %v1201 = vpop.f32.mrf.mxu0
  %v1202 = vadd.f32 %v953, %v1201
  %v1203 = vand.u32 %v80, 4294901760
  %1204 = vmatmul.f32.gmra.mxu0 %v1203
  %v1205 = vpop.f32.mrf.mxu0
  %v1206 = vadd.f32 %v959, %v1205
  %v1207 = vand.u32 %v83, 4294901760
  %1208 = vmatmul.f32.gmra.mxu0 %v1207
  %v1209 = vpop.f32.mrf.mxu0
  %v1210 = vadd.f32 %v965, %v1209
  %v1211 = vand.u32 %v86, 4294901760
  %1212 = vmatmul.f32.gmra.mxu0 %v1211
  %v1213 = vpop.f32.mrf.mxu0
  %v1214 = vadd.f32 %v971, %v1213
  %v1215 = vand.u32 %v89, 4294901760
  %1216 = vmatmul.f32.gmra.mxu0 %v1215
  %v1217 = vpop.f32.mrf.mxu0
  %v1218 = vadd.f32 %v977, %v1217
  %v1219 = vand.u32 %v92, 4294901760
  %1220 = vmatmul.f32.gmra.mxu0 %v1219
  %v1221 = vpop.f32.mrf.mxu0
  %v1222 = vadd.f32 %v983, %v1221
  %v1223 = vand.u32 %v95, 4294901760
  %1224 = vmatmul.f32.gmra.mxu0 %v1223
  %v1225 = vpop.f32.mrf.mxu0
  %v1226 = vadd.f32 %v989, %v1225
  %v1227 = vand.u32 %v98, 4294901760
  %1228 = vmatmul.f32.gmra.mxu0 %v1227
  %v1229 = vpop.f32.mrf.mxu0
  %v1230 = vadd.f32 %v995, %v1229
  %v1231 = vand.u32 %v101, 4294901760
  %1232 = vmatmul.f32.gmra.mxu0 %v1231
  %v1233 = vpop.f32.mrf.mxu0
  %v1234 = vadd.f32 %v1001, %v1233
  %v1235 = vand.u32 %v104, 4294901760
  %1236 = vmatmul.f32.gmra.mxu0 %v1235
  %v1237 = vpop.f32.mrf.mxu0
  %v1238 = vadd.f32 %v1007, %v1237
  %v1239 = vand.u32 %v107, 4294901760
  %1240 = vmatmul.f32.gmra.mxu0 %v1239
  %v1241 = vpop.f32.mrf.mxu0
  %v1242 = vadd.f32 %v1013, %v1241
  %v1243 = vand.u32 %v110, 4294901760
  %1244 = vmatmul.f32.gmra.mxu0 %v1243
  %v1245 = vpop.f32.mrf.mxu0
  %v1246 = vadd.f32 %v1019, %v1245
  %v1247 = vand.u32 %v113, 4294901760
  %1248 = vmatmul.f32.gmra.mxu0 %v1247
  %v1249 = vpop.f32.mrf.mxu0
  %v1250 = vadd.f32 %v1025, %v1249
  %v1251 = vand.u32 %v116, 4294901760
  %1252 = vmatmul.f32.gmra.mxu0 %v1251
  %v1253 = vpop.f32.mrf.mxu0
  %v1254 = vadd.f32 %v1031, %v1253
  %v1255 = vand.u32 %v119, 4294901760
  %1256 = vmatmul.f32.gmra.mxu0 %v1255
  %v1257 = vpop.f32.mrf.mxu0
  %v1258 = vadd.f32 %v1037, %v1257
  %v1259 = vand.u32 %v122, 4294901760
  %1260 = vmatmul.f32.gmra.mxu0 %v1259
  %v1261 = vpop.f32.mrf.mxu0
  %v1262 = vadd.f32 %v1043, %v1261
  %v1263 = vand.u32 %v125, 4294901760
  %1264 = vmatmul.f32.gmra.mxu0 %v1263
  %v1265 = vpop.f32.mrf.mxu0
  %v1266 = vadd.f32 %v1049, %v1265
  %v1267 = vand.u32 %v128, 4294901760
  %1268 = vmatmul.f32.gmra.mxu0 %v1267
  %v1269 = vpop.f32.mrf.mxu0
  %v1270 = vadd.f32 %v1055, %v1269
  %v1271 = vand.u32 %v131, 4294901760
  %1272 = vmatmul.f32.gmra.mxu0 %v1271
  %v1273 = vpop.f32.mrf.mxu0
  %v1274 = vadd.f32 %v1061, %v1273
  %v1275 = vand.u32 %v134, 4294901760
  %1276 = vmatmul.f32.gmra.mxu0 %v1275
  %v1277 = vpop.f32.mrf.mxu0
  %v1278 = vadd.f32 %v1067, %v1277
  %v1279 = vand.u32 %v137, 4294901760
  %1280 = vmatmul.f32.gmra.mxu0 %v1279
  %v1281 = vpop.f32.mrf.mxu0
  %v1282 = vadd.f32 %v1073, %v1281
  %v1283 = vand.u32 %v140, 4294901760
  %1284 = vmatmul.f32.gmra.mxu0 %v1283
  %v1285 = vpop.f32.mrf.mxu0
  %v1286 = vadd.f32 %v1079, %v1285
  %v1287 = vand.u32 %v143, 4294901760
  %1288 = vmatmul.f32.gmra.mxu0 %v1287
  %v1289 = vpop.f32.mrf.mxu0
  %v1290 = vadd.f32 %v1085, %v1289
  %v1291 = vand.u32 %v146, 4294901760
  %1292 = vmatmul.f32.gmra.mxu0 %v1291
  %v1293 = vpop.f32.mrf.mxu0
  %v1294 = vadd.f32 %v1091, %v1293
  %v1295 = vand.u32 %v149, 4294901760
  %1296 = vmatmul.f32.gmra.mxu0 %v1295
  %v1297 = vpop.f32.mrf.mxu0
  %v1298 = vadd.f32 %v1097, %v1297
  %v1299 = vand.u32 %v152, 4294901760
  %1300 = vmatmul.f32.gmra.mxu0 %v1299
  %v1301 = vpop.f32.mrf.mxu0
  %v1302 = vadd.f32 %v1103, %v1301
  %v1303 = vand.u32 %v155, 4294901760
  %1304 = vmatmul.f32.gmra.mxu0 %v1303
  %v1305 = vpop.f32.mrf.mxu0
  %v1306 = vadd.f32 %v1109, %v1305
  %v1307 = vand.u32 %v158, 4294901760
  %1308 = vmatmul.f32.gmra.mxu0 %v1307
  %v1309 = vpop.f32.mrf.mxu0
  %v1310 = vadd.f32 %v1115, %v1309
  %v1311 = vand.u32 %v161, 4294901760
  %1312 = vmatmul.f32.gmra.mxu0 %v1311
  %v1313 = vpop.f32.mrf.mxu0
  %v1314 = vadd.f32 %v1121, %v1313
  %v1315 = vand.u32 %v164, 4294901760
  %1316 = vmatmul.f32.gmra.mxu0 %v1315
  %v1317 = vpop.f32.mrf.mxu0
  %v1318 = vadd.f32 %v1127, %v1317
  %v1319 = vand.u32 %v167, 4294901760
  %1320 = vmatmul.f32.gmra.mxu0 %v1319
  %v1321 = vpop.f32.mrf.mxu0
  %v1322 = vadd.f32 %v1133, %v1321
  %v1323 = vand.u32 %v170, 4294901760
  %1324 = vmatmul.f32.gmra.mxu0 %v1323
  %v1325 = vpop.f32.mrf.mxu0
  %v1326 = vadd.f32 %v1139, %v1325
  %v1327 = vand.u32 %v173, 4294901760
  %1328 = vmatmul.f32.gmra.mxu0 %v1327
  %v1329 = vpop.f32.mrf.mxu0
  %v1330 = vadd.f32 %v1145, %v1329
  %v1331 = vand.u32 %v176, 4294901760
  %1332 = vmatmul.f32.gmra.mxu0 %v1331
  %v1333 = vpop.f32.mrf.mxu0
  %v1334 = vadd.f32 %v1151, %v1333
  %v1335 = vand.u32 %v179, 4294901760
  %1336 = vmatmul.f32.gmra.mxu0 %v1335
  %v1337 = vpop.f32.mrf.mxu0
  %v1338 = vadd.f32 %v1157, %v1337
  %1339 = vdwg.mxu0
  %1340 = vmatpush.msra.mxu0 0.0
  %1341 = vmatpush.msra.mxu0 0.0
  %1342 = vmatpush.msra.mxu0 0.0
  %1343 = vmatpush.msra.mxu0 0.0
  %1344 = vmatpush.msra.mxu0 0.0
  %1345 = vmatpush.msra.mxu0 0.0
  %1346 = vmatpush.msra.mxu0 0.0
  %1347 = vmatpush.msra.mxu0 0.0
  %1348 = vmatpush.msra.mxu0 0.0
  %1349 = vmatpush.msra.mxu0 0.0
  %1350 = vmatpush.msra.mxu0 0.0
  %1351 = vmatpush.msra.mxu0 0.0
  %v1352 = vand.u32 %v61, 4294901760
  %1353 = vmatpush.msra.mxu0 %v1352
  %v1354 = vand.u32 %v60, 4294901760
  %1355 = vmatpush.msra.mxu0 %v1354
  %v1356 = vand.u32 %v59, 4294901760
  %1357 = vmatpush.msra.mxu0 %v1356
  %v1358 = vand.u32 %v58, 4294901760
  %1359 = vmatpush.msra.mxu0 %v1358
  %v1360 = vand.u32 %v68, 4294901760
  %1361 = vmatmul.f32.gmra.mxu0 %v1360
  %v1362 = vpop.f32.mrf.mxu0
  %v1363 = vadd.f32 %v1190, %v1362
  %v1364 = vand.u32 %v71, 4294901760
  %1365 = vmatmul.f32.gmra.mxu0 %v1364
  %v1366 = vpop.f32.mrf.mxu0
  %v1367 = vadd.f32 %v1194, %v1366
  %v1368 = vand.u32 %v74, 4294901760
  %1369 = vmatmul.f32.gmra.mxu0 %v1368
  %v1370 = vpop.f32.mrf.mxu0
  %v1371 = vadd.f32 %v1198, %v1370
  %v1372 = vand.u32 %v77, 4294901760
  %1373 = vmatmul.f32.gmra.mxu0 %v1372
  %v1374 = vpop.f32.mrf.mxu0
  %v1375 = vadd.f32 %v1202, %v1374
  %v1376 = vand.u32 %v80, 4294901760
  %1377 = vmatmul.f32.gmra.mxu0 %v1376
  %v1378 = vpop.f32.mrf.mxu0
  %v1379 = vadd.f32 %v1206, %v1378
  %v1380 = vand.u32 %v83, 4294901760
  %1381 = vmatmul.f32.gmra.mxu0 %v1380
  %v1382 = vpop.f32.mrf.mxu0
  %v1383 = vadd.f32 %v1210, %v1382
  %v1384 = vand.u32 %v86, 4294901760
  %1385 = vmatmul.f32.gmra.mxu0 %v1384
  %v1386 = vpop.f32.mrf.mxu0
  %v1387 = vadd.f32 %v1214, %v1386
  %v1388 = vand.u32 %v89, 4294901760
  %1389 = vmatmul.f32.gmra.mxu0 %v1388
  %v1390 = vpop.f32.mrf.mxu0
  %v1391 = vadd.f32 %v1218, %v1390
  %v1392 = vand.u32 %v92, 4294901760
  %1393 = vmatmul.f32.gmra.mxu0 %v1392
  %v1394 = vpop.f32.mrf.mxu0
  %v1395 = vadd.f32 %v1222, %v1394
  %v1396 = vand.u32 %v95, 4294901760
  %1397 = vmatmul.f32.gmra.mxu0 %v1396
  %v1398 = vpop.f32.mrf.mxu0
  %v1399 = vadd.f32 %v1226, %v1398
  %v1400 = vand.u32 %v98, 4294901760
  %1401 = vmatmul.f32.gmra.mxu0 %v1400
  %v1402 = vpop.f32.mrf.mxu0
  %v1403 = vadd.f32 %v1230, %v1402
  %v1404 = vand.u32 %v101, 4294901760
  %1405 = vmatmul.f32.gmra.mxu0 %v1404
  %v1406 = vpop.f32.mrf.mxu0
  %v1407 = vadd.f32 %v1234, %v1406
  %v1408 = vand.u32 %v104, 4294901760
  %1409 = vmatmul.f32.gmra.mxu0 %v1408
  %v1410 = vpop.f32.mrf.mxu0
  %v1411 = vadd.f32 %v1238, %v1410
  %v1412 = vand.u32 %v107, 4294901760
  %1413 = vmatmul.f32.gmra.mxu0 %v1412
  %v1414 = vpop.f32.mrf.mxu0
  %v1415 = vadd.f32 %v1242, %v1414
  %v1416 = vand.u32 %v110, 4294901760
  %1417 = vmatmul.f32.gmra.mxu0 %v1416
  %v1418 = vpop.f32.mrf.mxu0
  %v1419 = vadd.f32 %v1246, %v1418
  %v1420 = vand.u32 %v113, 4294901760
  %1421 = vmatmul.f32.gmra.mxu0 %v1420
  %v1422 = vpop.f32.mrf.mxu0
  %v1423 = vadd.f32 %v1250, %v1422
  %v1424 = vand.u32 %v116, 4294901760
  %1425 = vmatmul.f32.gmra.mxu0 %v1424
  %v1426 = vpop.f32.mrf.mxu0
  %v1427 = vadd.f32 %v1254, %v1426
  %v1428 = vand.u32 %v119, 4294901760
  %1429 = vmatmul.f32.gmra.mxu0 %v1428
  %v1430 = vpop.f32.mrf.mxu0
  %v1431 = vadd.f32 %v1258, %v1430
  %v1432 = vand.u32 %v122, 4294901760
  %1433 = vmatmul.f32.gmra.mxu0 %v1432
  %v1434 = vpop.f32.mrf.mxu0
  %v1435 = vadd.f32 %v1262, %v1434
  %v1436 = vand.u32 %v125, 4294901760
  %1437 = vmatmul.f32.gmra.mxu0 %v1436
  %v1438 = vpop.f32.mrf.mxu0
  %v1439 = vadd.f32 %v1266, %v1438
  %v1440 = vand.u32 %v128, 4294901760
  %1441 = vmatmul.f32.gmra.mxu0 %v1440
  %v1442 = vpop.f32.mrf.mxu0
  %v1443 = vadd.f32 %v1270, %v1442
  %v1444 = vand.u32 %v131, 4294901760
  %1445 = vmatmul.f32.gmra.mxu0 %v1444
  %v1446 = vpop.f32.mrf.mxu0
  %v1447 = vadd.f32 %v1274, %v1446
  %v1448 = vand.u32 %v134, 4294901760
  %1449 = vmatmul.f32.gmra.mxu0 %v1448
  %v1450 = vpop.f32.mrf.mxu0
  %v1451 = vadd.f32 %v1278, %v1450
  %v1452 = vand.u32 %v137, 4294901760
  %1453 = vmatmul.f32.gmra.mxu0 %v1452
  %v1454 = vpop.f32.mrf.mxu0
  %v1455 = vadd.f32 %v1282, %v1454
  %v1456 = vand.u32 %v140, 4294901760
  %1457 = vmatmul.f32.gmra.mxu0 %v1456
  %v1458 = vpop.f32.mrf.mxu0
  %v1459 = vadd.f32 %v1286, %v1458
  %v1460 = vand.u32 %v143, 4294901760
  %1461 = vmatmul.f32.gmra.mxu0 %v1460
  %v1462 = vpop.f32.mrf.mxu0
  %v1463 = vadd.f32 %v1290, %v1462
  %v1464 = vand.u32 %v146, 4294901760
  %1465 = vmatmul.f32.gmra.mxu0 %v1464
  %v1466 = vpop.f32.mrf.mxu0
  %v1467 = vadd.f32 %v1294, %v1466
  %v1468 = vand.u32 %v149, 4294901760
  %1469 = vmatmul.f32.gmra.mxu0 %v1468
  %v1470 = vpop.f32.mrf.mxu0
  %v1471 = vadd.f32 %v1298, %v1470
  %v1472 = vand.u32 %v152, 4294901760
  %1473 = vmatmul.f32.gmra.mxu0 %v1472
  %v1474 = vpop.f32.mrf.mxu0
  %v1475 = vadd.f32 %v1302, %v1474
  %v1476 = vand.u32 %v155, 4294901760
  %1477 = vmatmul.f32.gmra.mxu0 %v1476
  %v1478 = vpop.f32.mrf.mxu0
  %v1479 = vadd.f32 %v1306, %v1478
  %v1480 = vand.u32 %v158, 4294901760
  %1481 = vmatmul.f32.gmra.mxu0 %v1480
  %v1482 = vpop.f32.mrf.mxu0
  %v1483 = vadd.f32 %v1310, %v1482
  %v1484 = vand.u32 %v161, 4294901760
  %1485 = vmatmul.f32.gmra.mxu0 %v1484
  %v1486 = vpop.f32.mrf.mxu0
  %v1487 = vadd.f32 %v1314, %v1486
  %v1488 = vand.u32 %v164, 4294901760
  %1489 = vmatmul.f32.gmra.mxu0 %v1488
  %v1490 = vpop.f32.mrf.mxu0
  %v1491 = vadd.f32 %v1318, %v1490
  %v1492 = vand.u32 %v167, 4294901760
  %1493 = vmatmul.f32.gmra.mxu0 %v1492
  %v1494 = vpop.f32.mrf.mxu0
  %v1495 = vadd.f32 %v1322, %v1494
  %v1496 = vand.u32 %v170, 4294901760
  %1497 = vmatmul.f32.gmra.mxu0 %v1496
  %v1498 = vpop.f32.mrf.mxu0
  %v1499 = vadd.f32 %v1326, %v1498
  %v1500 = vand.u32 %v173, 4294901760
  %1501 = vmatmul.f32.gmra.mxu0 %v1500
  %v1502 = vpop.f32.mrf.mxu0
  %v1503 = vadd.f32 %v1330, %v1502
  %v1504 = vand.u32 %v176, 4294901760
  %1505 = vmatmul.f32.gmra.mxu0 %v1504
  %v1506 = vpop.f32.mrf.mxu0
  %v1507 = vadd.f32 %v1334, %v1506
  %v1508 = vand.u32 %v179, 4294901760
  %1509 = vmatmul.f32.gmra.mxu0 %v1508
  %v1510 = vpop.f32.mrf.mxu0
  %v1511 = vadd.f32 %v1338, %v1510
  %1512 = vdwg.mxu0
  %v1513 = vmax.f32 %v1363, 0.0
  %v1514 = vmax.f32 %v1367, 0.0
  %v1515 = vmax.f32 %v1371, 0.0
  %v1516 = vmax.f32 %v1375, 0.0
  %v1517 = vmax.f32 %v1379, 0.0
  %v1518 = vmax.f32 %v1383, 0.0
  %v1519 = vmax.f32 %v1387, 0.0
  %v1520 = vmax.f32 %v1391, 0.0
  %v1521 = vmax.f32 %v1395, 0.0
  %v1522 = vmax.f32 %v1399, 0.0
  %v1523 = vmax.f32 %v1403, 0.0
  %v1524 = vmax.f32 %v1407, 0.0
  %v1525 = vmax.f32 %v1411, 0.0
  %v1526 = vmax.f32 %v1415, 0.0
  %v1527 = vmax.f32 %v1419, 0.0
  %v1528 = vmax.f32 %v1423, 0.0
  %v1529 = vmax.f32 %v1427, 0.0
  %v1530 = vmax.f32 %v1431, 0.0
  %v1531 = vmax.f32 %v1435, 0.0
  %v1532 = vmax.f32 %v1439, 0.0
  %v1533 = vmax.f32 %v1443, 0.0
  %v1534 = vmax.f32 %v1447, 0.0
  %v1535 = vmax.f32 %v1451, 0.0
  %v1536 = vmax.f32 %v1455, 0.0
  %v1537 = vmax.f32 %v1459, 0.0
  %v1538 = vmax.f32 %v1463, 0.0
  %v1539 = vmax.f32 %v1467, 0.0
  %v1540 = vmax.f32 %v1471, 0.0
  %v1541 = vmax.f32 %v1475, 0.0
  %v1542 = vmax.f32 %v1479, 0.0
  %v1543 = vmax.f32 %v1483, 0.0
  %v1544 = vmax.f32 %v1487, 0.0
  %v1545 = vmax.f32 %v1491, 0.0
  %v1546 = vmax.f32 %v1495, 0.0
  %v1547 = vmax.f32 %v1499, 0.0
  %v1548 = vmax.f32 %v1503, 0.0
  %v1549 = vmax.f32 %v1507, 0.0
  %v1550 = vmax.f32 %v1511, 0.0
  %v1551 = vld [vmem:[%s3] sm:$0xff]
  %v1552 = vld [vmem:[%s3 + $0x8] sm:$0xff]
  %v1553 = vld [vmem:[%s3 + $0x10] sm:$0xff]
  %v1554 = vld [vmem:[%s3 + $0x18] sm:$0xff]
  %v1555 = vld [vmem:[%s3 + $0x20] sm:$0xff]
  %v1556 = vld [vmem:[%s3 + $0x28] sm:$0xff]
  %v1557 = vld [vmem:[%s3 + $0x30] sm:$0xff]
  %v1558 = vld [vmem:[%s3 + $0x38] sm:$0xff]
  %v1559 = vld [vmem:[%s4] sm:$0x1]
  %v1561 = vperm.slane %v1559, 0
  %vm1563 = vcmask 523264
  %v1565 = vsel %vm1563, %v1513, 0
  %v1568 = vsel %vm1563, %v1514, 0
  %v1571 = vsel %vm1563, %v1515, 0
  %v1574 = vsel %vm1563, %v1516, 0
  %v1577 = vsel %vm1563, %v1517, 0
  %v1580 = vsel %vm1563, %v1518, 0
  %v1583 = vsel %vm1563, %v1519, 0
  %v1586 = vsel %vm1563, %v1520, 0
  %v1589 = vsel %vm1563, %v1521, 0
  %v1592 = vsel %vm1563, %v1522, 0
  %v1595 = vsel %vm1563, %v1523, 0
  %v1598 = vsel %vm1563, %v1524, 0
  %v1601 = vsel %vm1563, %v1525, 0
  %v1604 = vsel %vm1563, %v1526, 0
  %v1607 = vsel %vm1563, %v1527, 0
  %v1610 = vsel %vm1563, %v1528, 0
  %v1613 = vsel %vm1563, %v1529, 0
  %v1616 = vsel %vm1563, %v1530, 0
  %v1619 = vsel %vm1563, %v1531, 0
  %v1622 = vsel %vm1563, %v1532, 0
  %v1625 = vsel %vm1563, %v1533, 0
  %v1628 = vsel %vm1563, %v1534, 0
  %v1631 = vsel %vm1563, %v1535, 0
  %v1634 = vsel %vm1563, %v1536, 0
  %v1637 = vsel %vm1563, %v1537, 0
  %v1640 = vsel %vm1563, %v1538, 0
  %v1643 = vsel %vm1563, %v1539, 0
  %v1646 = vsel %vm1563, %v1540, 0
  %v1649 = vsel %vm1563, %v1541, 0
  %v1652 = vsel %vm1563, %v1542, 0
  %v1655 = vsel %vm1563, %v1543, 0
  %v1658 = vsel %vm1563, %v1544, 0
  %v1661 = vsel %vm1563, %v1545, 0
  %v1664 = vsel %vm1563, %v1546, 0
  %v1667 = vsel %vm1563, %v1547, 0
  %v1670 = vsel %vm1563, %v1548, 0
  %v1673 = vsel %vm1563, %v1549, 0
  %v1676 = vsel %vm1563, %v1550, 0
  %1678 = vmatpush.msra.mxu0 0.0
  %1679 = vmatpush.msra.mxu0 0.0
  %1680 = vmatpush.msra.mxu0 0.0
  %1681 = vmatpush.msra.mxu0 0.0
  %1682 = vmatpush.msra.mxu0 0.0
  %1683 = vmatpush.msra.mxu0 0.0
  %1684 = vmatpush.msra.mxu0 0.0
  %1685 = vmatpush.msra.mxu0 0.0
  %v1686 = vand.u32 %v1558, 4294901760
  %1687 = vmatpush.msra.mxu0 %v1686
  %v1688 = vand.u32 %v1557, 4294901760
  %1689 = vmatpush.msra.mxu0 %v1688
  %v1690 = vand.u32 %v1556, 4294901760
  %1691 = vmatpush.msra.mxu0 %v1690
  %v1692 = vand.u32 %v1555, 4294901760
  %1693 = vmatpush.msra.mxu0 %v1692
  %v1694 = vand.u32 %v1554, 4294901760
  %1695 = vmatpush.msra.mxu0 %v1694
  %v1696 = vand.u32 %v1553, 4294901760
  %1697 = vmatpush.msra.mxu0 %v1696
  %v1698 = vand.u32 %v1552, 4294901760
  %1699 = vmatpush.msra.mxu0 %v1698
  %v1700 = vand.u32 %v1551, 4294901760
  %1701 = vmatpush.msra.mxu0 %v1700
  %v1702 = vand.u32 %v1565, 4294901760
  %v1703 = vsub.f32 %v1565, %v1702
  %v1704 = vand.u32 %v1703, 4294901760
  %v1705 = vsub.f32 %v1703, %v1704
  %v1706 = vand.u32 %v1705, 4294901760
  %1707 = vmatmul.f32.gmra.mxu0 %v1706
  %v1708 = vpop.f32.mrf.mxu0
  %v1709 = vadd.f32 %v1561, %v1708
  %v1710 = vand.u32 %v1568, 4294901760
  %v1711 = vsub.f32 %v1568, %v1710
  %v1712 = vand.u32 %v1711, 4294901760
  %v1713 = vsub.f32 %v1711, %v1712
  %v1714 = vand.u32 %v1713, 4294901760
  %1715 = vmatmul.f32.gmra.mxu0 %v1714
  %v1716 = vpop.f32.mrf.mxu0
  %v1717 = vadd.f32 %v1561, %v1716
  %v1718 = vand.u32 %v1571, 4294901760
  %v1719 = vsub.f32 %v1571, %v1718
  %v1720 = vand.u32 %v1719, 4294901760
  %v1721 = vsub.f32 %v1719, %v1720
  %v1722 = vand.u32 %v1721, 4294901760
  %1723 = vmatmul.f32.gmra.mxu0 %v1722
  %v1724 = vpop.f32.mrf.mxu0
  %v1725 = vadd.f32 %v1561, %v1724
  %v1726 = vand.u32 %v1574, 4294901760
  %v1727 = vsub.f32 %v1574, %v1726
  %v1728 = vand.u32 %v1727, 4294901760
  %v1729 = vsub.f32 %v1727, %v1728
  %v1730 = vand.u32 %v1729, 4294901760
  %1731 = vmatmul.f32.gmra.mxu0 %v1730
  %v1732 = vpop.f32.mrf.mxu0
  %v1733 = vadd.f32 %v1561, %v1732
  %v1734 = vand.u32 %v1577, 4294901760
  %v1735 = vsub.f32 %v1577, %v1734
  %v1736 = vand.u32 %v1735, 4294901760
  %v1737 = vsub.f32 %v1735, %v1736
  %v1738 = vand.u32 %v1737, 4294901760
  %1739 = vmatmul.f32.gmra.mxu0 %v1738
  %v1740 = vpop.f32.mrf.mxu0
  %v1741 = vadd.f32 %v1561, %v1740
  %v1742 = vand.u32 %v1580, 4294901760
  %v1743 = vsub.f32 %v1580, %v1742
  %v1744 = vand.u32 %v1743, 4294901760
  %v1745 = vsub.f32 %v1743, %v1744
  %v1746 = vand.u32 %v1745, 4294901760
  %1747 = vmatmul.f32.gmra.mxu0 %v1746
  %v1748 = vpop.f32.mrf.mxu0
  %v1749 = vadd.f32 %v1561, %v1748
  %v1750 = vand.u32 %v1583, 4294901760
  %v1751 = vsub.f32 %v1583, %v1750
  %v1752 = vand.u32 %v1751, 4294901760
  %v1753 = vsub.f32 %v1751, %v1752
  %v1754 = vand.u32 %v1753, 4294901760
  %1755 = vmatmul.f32.gmra.mxu0 %v1754
  %v1756 = vpop.f32.mrf.mxu0
  %v1757 = vadd.f32 %v1561, %v1756
  %v1758 = vand.u32 %v1586, 4294901760
  %v1759 = vsub.f32 %v1586, %v1758
  %v1760 = vand.u32 %v1759, 4294901760
  %v1761 = vsub.f32 %v1759, %v1760
  %v1762 = vand.u32 %v1761, 4294901760
  %1763 = vmatmul.f32.gmra.mxu0 %v1762
  %v1764 = vpop.f32.mrf.mxu0
  %v1765 = vadd.f32 %v1561, %v1764
  %v1766 = vand.u32 %v1589, 4294901760
  %v1767 = vsub.f32 %v1589, %v1766
  %v1768 = vand.u32 %v1767, 4294901760
  %v1769 = vsub.f32 %v1767, %v1768
  %v1770 = vand.u32 %v1769, 4294901760
  %1771 = vmatmul.f32.gmra.mxu0 %v1770
  %v1772 = vpop.f32.mrf.mxu0
  %v1773 = vadd.f32 %v1561, %v1772
  %v1774 = vand.u32 %v1592, 4294901760
  %v1775 = vsub.f32 %v1592, %v1774
  %v1776 = vand.u32 %v1775, 4294901760
  %v1777 = vsub.f32 %v1775, %v1776
  %v1778 = vand.u32 %v1777, 4294901760
  %1779 = vmatmul.f32.gmra.mxu0 %v1778
  %v1780 = vpop.f32.mrf.mxu0
  %v1781 = vadd.f32 %v1561, %v1780
  %v1782 = vand.u32 %v1595, 4294901760
  %v1783 = vsub.f32 %v1595, %v1782
  %v1784 = vand.u32 %v1783, 4294901760
  %v1785 = vsub.f32 %v1783, %v1784
  %v1786 = vand.u32 %v1785, 4294901760
  %1787 = vmatmul.f32.gmra.mxu0 %v1786
  %v1788 = vpop.f32.mrf.mxu0
  %v1789 = vadd.f32 %v1561, %v1788
  %v1790 = vand.u32 %v1598, 4294901760
  %v1791 = vsub.f32 %v1598, %v1790
  %v1792 = vand.u32 %v1791, 4294901760
  %v1793 = vsub.f32 %v1791, %v1792
  %v1794 = vand.u32 %v1793, 4294901760
  %1795 = vmatmul.f32.gmra.mxu0 %v1794
  %v1796 = vpop.f32.mrf.mxu0
  %v1797 = vadd.f32 %v1561, %v1796
  %v1798 = vand.u32 %v1601, 4294901760
  %v1799 = vsub.f32 %v1601, %v1798
  %v1800 = vand.u32 %v1799, 4294901760
  %v1801 = vsub.f32 %v1799, %v1800
  %v1802 = vand.u32 %v1801, 4294901760
  %1803 = vmatmul.f32.gmra.mxu0 %v1802
  %v1804 = vpop.f32.mrf.mxu0
  %v1805 = vadd.f32 %v1561, %v1804
  %v1806 = vand.u32 %v1604, 4294901760
  %v1807 = vsub.f32 %v1604, %v1806
  %v1808 = vand.u32 %v1807, 4294901760
  %v1809 = vsub.f32 %v1807, %v1808
  %v1810 = vand.u32 %v1809, 4294901760
  %1811 = vmatmul.f32.gmra.mxu0 %v1810
  %v1812 = vpop.f32.mrf.mxu0
  %v1813 = vadd.f32 %v1561, %v1812
  %v1814 = vand.u32 %v1607, 4294901760
  %v1815 = vsub.f32 %v1607, %v1814
  %v1816 = vand.u32 %v1815, 4294901760
  %v1817 = vsub.f32 %v1815, %v1816
  %v1818 = vand.u32 %v1817, 4294901760
  %1819 = vmatmul.f32.gmra.mxu0 %v1818
  %v1820 = vpop.f32.mrf.mxu0
  %v1821 = vadd.f32 %v1561, %v1820
  %v1822 = vand.u32 %v1610, 4294901760
  %v1823 = vsub.f32 %v1610, %v1822
  %v1824 = vand.u32 %v1823, 4294901760
  %v1825 = vsub.f32 %v1823, %v1824
  %v1826 = vand.u32 %v1825, 4294901760
  %1827 = vmatmul.f32.gmra.mxu0 %v1826
  %v1828 = vpop.f32.mrf.mxu0
  %v1829 = vadd.f32 %v1561, %v1828
  %v1830 = vand.u32 %v1613, 4294901760
  %v1831 = vsub.f32 %v1613, %v1830
  %v1832 = vand.u32 %v1831, 4294901760
  %v1833 = vsub.f32 %v1831, %v1832
  %v1834 = vand.u32 %v1833, 4294901760
  %1835 = vmatmul.f32.gmra.mxu0 %v1834
  %v1836 = vpop.f32.mrf.mxu0
  %v1837 = vadd.f32 %v1561, %v1836
  %v1838 = vand.u32 %v1616, 4294901760
  %v1839 = vsub.f32 %v1616, %v1838
  %v1840 = vand.u32 %v1839, 4294901760
  %v1841 = vsub.f32 %v1839, %v1840
  %v1842 = vand.u32 %v1841, 4294901760
  %1843 = vmatmul.f32.gmra.mxu0 %v1842
  %v1844 = vpop.f32.mrf.mxu0
  %v1845 = vadd.f32 %v1561, %v1844
  %v1846 = vand.u32 %v1619, 4294901760
  %v1847 = vsub.f32 %v1619, %v1846
  %v1848 = vand.u32 %v1847, 4294901760
  %v1849 = vsub.f32 %v1847, %v1848
  %v1850 = vand.u32 %v1849, 4294901760
  %1851 = vmatmul.f32.gmra.mxu0 %v1850
  %v1852 = vpop.f32.mrf.mxu0
  %v1853 = vadd.f32 %v1561, %v1852
  %v1854 = vand.u32 %v1622, 4294901760
  %v1855 = vsub.f32 %v1622, %v1854
  %v1856 = vand.u32 %v1855, 4294901760
  %v1857 = vsub.f32 %v1855, %v1856
  %v1858 = vand.u32 %v1857, 4294901760
  %1859 = vmatmul.f32.gmra.mxu0 %v1858
  %v1860 = vpop.f32.mrf.mxu0
  %v1861 = vadd.f32 %v1561, %v1860
  %v1862 = vand.u32 %v1625, 4294901760
  %v1863 = vsub.f32 %v1625, %v1862
  %v1864 = vand.u32 %v1863, 4294901760
  %v1865 = vsub.f32 %v1863, %v1864
  %v1866 = vand.u32 %v1865, 4294901760
  %1867 = vmatmul.f32.gmra.mxu0 %v1866
  %v1868 = vpop.f32.mrf.mxu0
  %v1869 = vadd.f32 %v1561, %v1868
  %v1870 = vand.u32 %v1628, 4294901760
  %v1871 = vsub.f32 %v1628, %v1870
  %v1872 = vand.u32 %v1871, 4294901760
  %v1873 = vsub.f32 %v1871, %v1872
  %v1874 = vand.u32 %v1873, 4294901760
  %1875 = vmatmul.f32.gmra.mxu0 %v1874
  %v1876 = vpop.f32.mrf.mxu0
  %v1877 = vadd.f32 %v1561, %v1876
  %v1878 = vand.u32 %v1631, 4294901760
  %v1879 = vsub.f32 %v1631, %v1878
  %v1880 = vand.u32 %v1879, 4294901760
  %v1881 = vsub.f32 %v1879, %v1880
  %v1882 = vand.u32 %v1881, 4294901760
  %1883 = vmatmul.f32.gmra.mxu0 %v1882
  %v1884 = vpop.f32.mrf.mxu0
  %v1885 = vadd.f32 %v1561, %v1884
  %v1886 = vand.u32 %v1634, 4294901760
  %v1887 = vsub.f32 %v1634, %v1886
  %v1888 = vand.u32 %v1887, 4294901760
  %v1889 = vsub.f32 %v1887, %v1888
  %v1890 = vand.u32 %v1889, 4294901760
  %1891 = vmatmul.f32.gmra.mxu0 %v1890
  %v1892 = vpop.f32.mrf.mxu0
  %v1893 = vadd.f32 %v1561, %v1892
  %v1894 = vand.u32 %v1637, 4294901760
  %v1895 = vsub.f32 %v1637, %v1894
  %v1896 = vand.u32 %v1895, 4294901760
  %v1897 = vsub.f32 %v1895, %v1896
  %v1898 = vand.u32 %v1897, 4294901760
  %1899 = vmatmul.f32.gmra.mxu0 %v1898
  %v1900 = vpop.f32.mrf.mxu0
  %v1901 = vadd.f32 %v1561, %v1900
  %v1902 = vand.u32 %v1640, 4294901760
  %v1903 = vsub.f32 %v1640, %v1902
  %v1904 = vand.u32 %v1903, 4294901760
  %v1905 = vsub.f32 %v1903, %v1904
  %v1906 = vand.u32 %v1905, 4294901760
  %1907 = vmatmul.f32.gmra.mxu0 %v1906
  %v1908 = vpop.f32.mrf.mxu0
  %v1909 = vadd.f32 %v1561, %v1908
  %v1910 = vand.u32 %v1643, 4294901760
  %v1911 = vsub.f32 %v1643, %v1910
  %v1912 = vand.u32 %v1911, 4294901760
  %v1913 = vsub.f32 %v1911, %v1912
  %v1914 = vand.u32 %v1913, 4294901760
  %1915 = vmatmul.f32.gmra.mxu0 %v1914
  %v1916 = vpop.f32.mrf.mxu0
  %v1917 = vadd.f32 %v1561, %v1916
  %v1918 = vand.u32 %v1646, 4294901760
  %v1919 = vsub.f32 %v1646, %v1918
  %v1920 = vand.u32 %v1919, 4294901760
  %v1921 = vsub.f32 %v1919, %v1920
  %v1922 = vand.u32 %v1921, 4294901760
  %1923 = vmatmul.f32.gmra.mxu0 %v1922
  %v1924 = vpop.f32.mrf.mxu0
  %v1925 = vadd.f32 %v1561, %v1924
  %v1926 = vand.u32 %v1649, 4294901760
  %v1927 = vsub.f32 %v1649, %v1926
  %v1928 = vand.u32 %v1927, 4294901760
  %v1929 = vsub.f32 %v1927, %v1928
  %v1930 = vand.u32 %v1929, 4294901760
  %1931 = vmatmul.f32.gmra.mxu0 %v1930
  %v1932 = vpop.f32.mrf.mxu0
  %v1933 = vadd.f32 %v1561, %v1932
  %v1934 = vand.u32 %v1652, 4294901760
  %v1935 = vsub.f32 %v1652, %v1934
  %v1936 = vand.u32 %v1935, 4294901760
  %v1937 = vsub.f32 %v1935, %v1936
  %v1938 = vand.u32 %v1937, 4294901760
  %1939 = vmatmul.f32.gmra.mxu0 %v1938
  %v1940 = vpop.f32.mrf.mxu0
  %v1941 = vadd.f32 %v1561, %v1940
  %v1942 = vand.u32 %v1655, 4294901760
  %v1943 = vsub.f32 %v1655, %v1942
  %v1944 = vand.u32 %v1943, 4294901760
  %v1945 = vsub.f32 %v1943, %v1944
  %v1946 = vand.u32 %v1945, 4294901760
  %1947 = vmatmul.f32.gmra.mxu0 %v1946
  %v1948 = vpop.f32.mrf.mxu0
  %v1949 = vadd.f32 %v1561, %v1948
  %v1950 = vand.u32 %v1658, 4294901760
  %v1951 = vsub.f32 %v1658, %v1950
  %v1952 = vand.u32 %v1951, 4294901760
  %v1953 = vsub.f32 %v1951, %v1952
  %v1954 = vand.u32 %v1953, 4294901760
  %1955 = vmatmul.f32.gmra.mxu0 %v1954
  %v1956 = vpop.f32.mrf.mxu0
  %v1957 = vadd.f32 %v1561, %v1956
  %v1958 = vand.u32 %v1661, 4294901760
  %v1959 = vsub.f32 %v1661, %v1958
  %v1960 = vand.u32 %v1959, 4294901760
  %v1961 = vsub.f32 %v1959, %v1960
  %v1962 = vand.u32 %v1961, 4294901760
  %1963 = vmatmul.f32.gmra.mxu0 %v1962
  %v1964 = vpop.f32.mrf.mxu0
  %v1965 = vadd.f32 %v1561, %v1964
  %v1966 = vand.u32 %v1664, 4294901760
  %v1967 = vsub.f32 %v1664, %v1966
  %v1968 = vand.u32 %v1967, 4294901760
  %v1969 = vsub.f32 %v1967, %v1968
  %v1970 = vand.u32 %v1969, 4294901760
  %1971 = vmatmul.f32.gmra.mxu0 %v1970
  %v1972 = vpop.f32.mrf.mxu0
  %v1973 = vadd.f32 %v1561, %v1972
  %v1974 = vand.u32 %v1667, 4294901760
  %v1975 = vsub.f32 %v1667, %v1974
  %v1976 = vand.u32 %v1975, 4294901760
  %v1977 = vsub.f32 %v1975, %v1976
  %v1978 = vand.u32 %v1977, 4294901760
  %1979 = vmatmul.f32.gmra.mxu0 %v1978
  %v1980 = vpop.f32.mrf.mxu0
  %v1981 = vadd.f32 %v1561, %v1980
  %v1982 = vand.u32 %v1670, 4294901760
  %v1983 = vsub.f32 %v1670, %v1982
  %v1984 = vand.u32 %v1983, 4294901760
  %v1985 = vsub.f32 %v1983, %v1984
  %v1986 = vand.u32 %v1985, 4294901760
  %1987 = vmatmul.f32.gmra.mxu0 %v1986
  %v1988 = vpop.f32.mrf.mxu0
  %v1989 = vadd.f32 %v1561, %v1988
  %v1990 = vand.u32 %v1673, 4294901760
  %v1991 = vsub.f32 %v1673, %v1990
  %v1992 = vand.u32 %v1991, 4294901760
  %v1993 = vsub.f32 %v1991, %v1992
  %v1994 = vand.u32 %v1993, 4294901760
  %1995 = vmatmul.f32.gmra.mxu0 %v1994
  %v1996 = vpop.f32.mrf.mxu0
  %v1997 = vadd.f32 %v1561, %v1996
  %v1998 = vand.u32 %v1676, 4294901760
  %v1999 = vsub.f32 %v1676, %v1998
  %v2000 = vand.u32 %v1999, 4294901760
  %v2001 = vsub.f32 %v1999, %v2000
  %v2002 = vand.u32 %v2001, 4294901760
  %2003 = vmatmul.f32.gmra.mxu0 %v2002
  %v2004 = vpop.f32.mrf.mxu0
  %v2005 = vadd.f32 %v1561, %v2004
  %2006 = vdwg.mxu0
  %2007 = vmatpush.msra.mxu0 0.0
  %2008 = vmatpush.msra.mxu0 0.0
  %2009 = vmatpush.msra.mxu0 0.0
  %2010 = vmatpush.msra.mxu0 0.0
  %2011 = vmatpush.msra.mxu0 0.0
  %2012 = vmatpush.msra.mxu0 0.0
  %2013 = vmatpush.msra.mxu0 0.0
  %2014 = vmatpush.msra.mxu0 0.0
  %v2015 = vand.u32 %v1558, 4294901760
  %v2016 = vsub.f32 %v1558, %v2015
  %v2017 = vand.u32 %v2016, 4294901760
  %v2018 = vsub.f32 %v2016, %v2017
  %v2019 = vand.u32 %v2018, 4294901760
  %2020 = vmatpush.msra.mxu0 %v2019
  %v2021 = vand.u32 %v1557, 4294901760
  %v2022 = vsub.f32 %v1557, %v2021
  %v2023 = vand.u32 %v2022, 4294901760
  %v2024 = vsub.f32 %v2022, %v2023
  %v2025 = vand.u32 %v2024, 4294901760
  %2026 = vmatpush.msra.mxu0 %v2025
  %v2027 = vand.u32 %v1556, 4294901760
  %v2028 = vsub.f32 %v1556, %v2027
  %v2029 = vand.u32 %v2028, 4294901760
  %v2030 = vsub.f32 %v2028, %v2029
  %v2031 = vand.u32 %v2030, 4294901760
  %2032 = vmatpush.msra.mxu0 %v2031
  %v2033 = vand.u32 %v1555, 4294901760
  %v2034 = vsub.f32 %v1555, %v2033
  %v2035 = vand.u32 %v2034, 4294901760
  %v2036 = vsub.f32 %v2034, %v2035
  %v2037 = vand.u32 %v2036, 4294901760
  %2038 = vmatpush.msra.mxu0 %v2037
  %v2039 = vand.u32 %v1554, 4294901760
  %v2040 = vsub.f32 %v1554, %v2039
  %v2041 = vand.u32 %v2040, 4294901760
  %v2042 = vsub.f32 %v2040, %v2041
  %v2043 = vand.u32 %v2042, 4294901760
  %2044 = vmatpush.msra.mxu0 %v2043
  %v2045 = vand.u32 %v1553, 4294901760
  %v2046 = vsub.f32 %v1553, %v2045
  %v2047 = vand.u32 %v2046, 4294901760
  %v2048 = vsub.f32 %v2046, %v2047
  %v2049 = vand.u32 %v2048, 4294901760
  %2050 = vmatpush.msra.mxu0 %v2049
  %v2051 = vand.u32 %v1552, 4294901760
  %v2052 = vsub.f32 %v1552, %v2051
  %v2053 = vand.u32 %v2052, 4294901760
  %v2054 = vsub.f32 %v2052, %v2053
  %v2055 = vand.u32 %v2054, 4294901760
  %2056 = vmatpush.msra.mxu0 %v2055
  %v2057 = vand.u32 %v1551, 4294901760
  %v2058 = vsub.f32 %v1551, %v2057
  %v2059 = vand.u32 %v2058, 4294901760
  %v2060 = vsub.f32 %v2058, %v2059
  %v2061 = vand.u32 %v2060, 4294901760
  %2062 = vmatpush.msra.mxu0 %v2061
  %v2063 = vand.u32 %v1565, 4294901760
  %2064 = vmatmul.f32.gmra.mxu0 %v2063
  %v2065 = vpop.f32.mrf.mxu0
  %v2066 = vadd.f32 %v1709, %v2065
  %v2067 = vand.u32 %v1568, 4294901760
  %2068 = vmatmul.f32.gmra.mxu0 %v2067
  %v2069 = vpop.f32.mrf.mxu0
  %v2070 = vadd.f32 %v1717, %v2069
  %v2071 = vand.u32 %v1571, 4294901760
  %2072 = vmatmul.f32.gmra.mxu0 %v2071
  %v2073 = vpop.f32.mrf.mxu0
  %v2074 = vadd.f32 %v1725, %v2073
  %v2075 = vand.u32 %v1574, 4294901760
  %2076 = vmatmul.f32.gmra.mxu0 %v2075
  %v2077 = vpop.f32.mrf.mxu0
  %v2078 = vadd.f32 %v1733, %v2077
  %v2079 = vand.u32 %v1577, 4294901760
  %2080 = vmatmul.f32.gmra.mxu0 %v2079
  %v2081 = vpop.f32.mrf.mxu0
  %v2082 = vadd.f32 %v1741, %v2081
  %v2083 = vand.u32 %v1580, 4294901760
  %2084 = vmatmul.f32.gmra.mxu0 %v2083
  %v2085 = vpop.f32.mrf.mxu0
  %v2086 = vadd.f32 %v1749, %v2085
  %v2087 = vand.u32 %v1583, 4294901760
  %2088 = vmatmul.f32.gmra.mxu0 %v2087
  %v2089 = vpop.f32.mrf.mxu0
  %v2090 = vadd.f32 %v1757, %v2089
  %v2091 = vand.u32 %v1586, 4294901760
  %2092 = vmatmul.f32.gmra.mxu0 %v2091
  %v2093 = vpop.f32.mrf.mxu0
  %v2094 = vadd.f32 %v1765, %v2093
  %v2095 = vand.u32 %v1589, 4294901760
  %2096 = vmatmul.f32.gmra.mxu0 %v2095
  %v2097 = vpop.f32.mrf.mxu0
  %v2098 = vadd.f32 %v1773, %v2097
  %v2099 = vand.u32 %v1592, 4294901760
  %2100 = vmatmul.f32.gmra.mxu0 %v2099
  %v2101 = vpop.f32.mrf.mxu0
  %v2102 = vadd.f32 %v1781, %v2101
  %v2103 = vand.u32 %v1595, 4294901760
  %2104 = vmatmul.f32.gmra.mxu0 %v2103
  %v2105 = vpop.f32.mrf.mxu0
  %v2106 = vadd.f32 %v1789, %v2105
  %v2107 = vand.u32 %v1598, 4294901760
  %2108 = vmatmul.f32.gmra.mxu0 %v2107
  %v2109 = vpop.f32.mrf.mxu0
  %v2110 = vadd.f32 %v1797, %v2109
  %v2111 = vand.u32 %v1601, 4294901760
  %2112 = vmatmul.f32.gmra.mxu0 %v2111
  %v2113 = vpop.f32.mrf.mxu0
  %v2114 = vadd.f32 %v1805, %v2113
  %v2115 = vand.u32 %v1604, 4294901760
  %2116 = vmatmul.f32.gmra.mxu0 %v2115
  %v2117 = vpop.f32.mrf.mxu0
  %v2118 = vadd.f32 %v1813, %v2117
  %v2119 = vand.u32 %v1607, 4294901760
  %2120 = vmatmul.f32.gmra.mxu0 %v2119
  %v2121 = vpop.f32.mrf.mxu0
  %v2122 = vadd.f32 %v1821, %v2121
  %v2123 = vand.u32 %v1610, 4294901760
  %2124 = vmatmul.f32.gmra.mxu0 %v2123
  %v2125 = vpop.f32.mrf.mxu0
  %v2126 = vadd.f32 %v1829, %v2125
  %v2127 = vand.u32 %v1613, 4294901760
  %2128 = vmatmul.f32.gmra.mxu0 %v2127
  %v2129 = vpop.f32.mrf.mxu0
  %v2130 = vadd.f32 %v1837, %v2129
  %v2131 = vand.u32 %v1616, 4294901760
  %2132 = vmatmul.f32.gmra.mxu0 %v2131
  %v2133 = vpop.f32.mrf.mxu0
  %v2134 = vadd.f32 %v1845, %v2133
  %v2135 = vand.u32 %v1619, 4294901760
  %2136 = vmatmul.f32.gmra.mxu0 %v2135
  %v2137 = vpop.f32.mrf.mxu0
  %v2138 = vadd.f32 %v1853, %v2137
  %v2139 = vand.u32 %v1622, 4294901760
  %2140 = vmatmul.f32.gmra.mxu0 %v2139
  %v2141 = vpop.f32.mrf.mxu0
  %v2142 = vadd.f32 %v1861, %v2141
  %v2143 = vand.u32 %v1625, 4294901760
  %2144 = vmatmul.f32.gmra.mxu0 %v2143
  %v2145 = vpop.f32.mrf.mxu0
  %v2146 = vadd.f32 %v1869, %v2145
  %v2147 = vand.u32 %v1628, 4294901760
  %2148 = vmatmul.f32.gmra.mxu0 %v2147
  %v2149 = vpop.f32.mrf.mxu0
  %v2150 = vadd.f32 %v1877, %v2149
  %v2151 = vand.u32 %v1631, 4294901760
  %2152 = vmatmul.f32.gmra.mxu0 %v2151
  %v2153 = vpop.f32.mrf.mxu0
  %v2154 = vadd.f32 %v1885, %v2153
  %v2155 = vand.u32 %v1634, 4294901760
  %2156 = vmatmul.f32.gmra.mxu0 %v2155
  %v2157 = vpop.f32.mrf.mxu0
  %v2158 = vadd.f32 %v1893, %v2157
  %v2159 = vand.u32 %v1637, 4294901760
  %2160 = vmatmul.f32.gmra.mxu0 %v2159
  %v2161 = vpop.f32.mrf.mxu0
  %v2162 = vadd.f32 %v1901, %v2161
  %v2163 = vand.u32 %v1640, 4294901760
  %2164 = vmatmul.f32.gmra.mxu0 %v2163
  %v2165 = vpop.f32.mrf.mxu0
  %v2166 = vadd.f32 %v1909, %v2165
  %v2167 = vand.u32 %v1643, 4294901760
  %2168 = vmatmul.f32.gmra.mxu0 %v2167
  %v2169 = vpop.f32.mrf.mxu0
  %v2170 = vadd.f32 %v1917, %v2169
  %v2171 = vand.u32 %v1646, 4294901760
  %2172 = vmatmul.f32.gmra.mxu0 %v2171
  %v2173 = vpop.f32.mrf.mxu0
  %v2174 = vadd.f32 %v1925, %v2173
  %v2175 = vand.u32 %v1649, 4294901760
  %2176 = vmatmul.f32.gmra.mxu0 %v2175
  %v2177 = vpop.f32.mrf.mxu0
  %v2178 = vadd.f32 %v1933, %v2177
  %v2179 = vand.u32 %v1652, 4294901760
  %2180 = vmatmul.f32.gmra.mxu0 %v2179
  %v2181 = vpop.f32.mrf.mxu0
  %v2182 = vadd.f32 %v1941, %v2181
  %v2183 = vand.u32 %v1655, 4294901760
  %2184 = vmatmul.f32.gmra.mxu0 %v2183
  %v2185 = vpop.f32.mrf.mxu0
  %v2186 = vadd.f32 %v1949, %v2185
  %v2187 = vand.u32 %v1658, 4294901760
  %2188 = vmatmul.f32.gmra.mxu0 %v2187
  %v2189 = vpop.f32.mrf.mxu0
  %v2190 = vadd.f32 %v1957, %v2189
  %v2191 = vand.u32 %v1661, 4294901760
  %2192 = vmatmul.f32.gmra.mxu0 %v2191
  %v2193 = vpop.f32.mrf.mxu0
  %v2194 = vadd.f32 %v1965, %v2193
  %v2195 = vand.u32 %v1664, 4294901760
  %2196 = vmatmul.f32.gmra.mxu0 %v2195
  %v2197 = vpop.f32.mrf.mxu0
  %v2198 = vadd.f32 %v1973, %v2197
  %v2199 = vand.u32 %v1667, 4294901760
  %2200 = vmatmul.f32.gmra.mxu0 %v2199
  %v2201 = vpop.f32.mrf.mxu0
  %v2202 = vadd.f32 %v1981, %v2201
  %v2203 = vand.u32 %v1670, 4294901760
  %2204 = vmatmul.f32.gmra.mxu0 %v2203
  %v2205 = vpop.f32.mrf.mxu0
  %v2206 = vadd.f32 %v1989, %v2205
  %v2207 = vand.u32 %v1673, 4294901760
  %2208 = vmatmul.f32.gmra.mxu0 %v2207
  %v2209 = vpop.f32.mrf.mxu0
  %v2210 = vadd.f32 %v1997, %v2209
  %v2211 = vand.u32 %v1676, 4294901760
  %2212 = vmatmul.f32.gmra.mxu0 %v2211
  %v2213 = vpop.f32.mrf.mxu0
  %v2214 = vadd.f32 %v2005, %v2213
  %2215 = vdwg.mxu0
  %2216 = vmatpush.msra.mxu0 0.0
  %2217 = vmatpush.msra.mxu0 0.0
  %2218 = vmatpush.msra.mxu0 0.0
  %2219 = vmatpush.msra.mxu0 0.0
  %2220 = vmatpush.msra.mxu0 0.0
  %2221 = vmatpush.msra.mxu0 0.0
  %2222 = vmatpush.msra.mxu0 0.0
  %2223 = vmatpush.msra.mxu0 0.0
  %v2224 = vand.u32 %v1558, 4294901760
  %v2225 = vsub.f32 %v1558, %v2224
  %2226 = vmatpush.msra.mxu0 %v2225
  %v2227 = vand.u32 %v1557, 4294901760
  %v2228 = vsub.f32 %v1557, %v2227
  %2229 = vmatpush.msra.mxu0 %v2228
  %v2230 = vand.u32 %v1556, 4294901760
  %v2231 = vsub.f32 %v1556, %v2230
  %2232 = vmatpush.msra.mxu0 %v2231
  %v2233 = vand.u32 %v1555, 4294901760
  %v2234 = vsub.f32 %v1555, %v2233
  %2235 = vmatpush.msra.mxu0 %v2234
  %v2236 = vand.u32 %v1554, 4294901760
  %v2237 = vsub.f32 %v1554, %v2236
  %2238 = vmatpush.msra.mxu0 %v2237
  %v2239 = vand.u32 %v1553, 4294901760
  %v2240 = vsub.f32 %v1553, %v2239
  %2241 = vmatpush.msra.mxu0 %v2240
  %v2242 = vand.u32 %v1552, 4294901760
  %v2243 = vsub.f32 %v1552, %v2242
  %2244 = vmatpush.msra.mxu0 %v2243
  %v2245 = vand.u32 %v1551, 4294901760
  %v2246 = vsub.f32 %v1551, %v2245
  %2247 = vmatpush.msra.mxu0 %v2246
  %v2248 = vand.u32 %v1565, 4294901760
  %v2249 = vsub.f32 %v1565, %v2248
  %2250 = vmatmul.f32.gmra.mxu0 %v2249
  %v2251 = vpop.f32.mrf.mxu0
  %v2252 = vadd.f32 %v2066, %v2251
  %v2253 = vand.u32 %v1568, 4294901760
  %v2254 = vsub.f32 %v1568, %v2253
  %2255 = vmatmul.f32.gmra.mxu0 %v2254
  %v2256 = vpop.f32.mrf.mxu0
  %v2257 = vadd.f32 %v2070, %v2256
  %v2258 = vand.u32 %v1571, 4294901760
  %v2259 = vsub.f32 %v1571, %v2258
  %2260 = vmatmul.f32.gmra.mxu0 %v2259
  %v2261 = vpop.f32.mrf.mxu0
  %v2262 = vadd.f32 %v2074, %v2261
  %v2263 = vand.u32 %v1574, 4294901760
  %v2264 = vsub.f32 %v1574, %v2263
  %2265 = vmatmul.f32.gmra.mxu0 %v2264
  %v2266 = vpop.f32.mrf.mxu0
  %v2267 = vadd.f32 %v2078, %v2266
  %v2268 = vand.u32 %v1577, 4294901760
  %v2269 = vsub.f32 %v1577, %v2268
  %2270 = vmatmul.f32.gmra.mxu0 %v2269
  %v2271 = vpop.f32.mrf.mxu0
  %v2272 = vadd.f32 %v2082, %v2271
  %v2273 = vand.u32 %v1580, 4294901760
  %v2274 = vsub.f32 %v1580, %v2273
  %2275 = vmatmul.f32.gmra.mxu0 %v2274
  %v2276 = vpop.f32.mrf.mxu0
  %v2277 = vadd.f32 %v2086, %v2276
  %v2278 = vand.u32 %v1583, 4294901760
  %v2279 = vsub.f32 %v1583, %v2278
  %2280 = vmatmul.f32.gmra.mxu0 %v2279
  %v2281 = vpop.f32.mrf.mxu0
  %v2282 = vadd.f32 %v2090, %v2281
  %v2283 = vand.u32 %v1586, 4294901760
  %v2284 = vsub.f32 %v1586, %v2283
  %2285 = vmatmul.f32.gmra.mxu0 %v2284
  %v2286 = vpop.f32.mrf.mxu0
  %v2287 = vadd.f32 %v2094, %v2286
  %v2288 = vand.u32 %v1589, 4294901760
  %v2289 = vsub.f32 %v1589, %v2288
  %2290 = vmatmul.f32.gmra.mxu0 %v2289
  %v2291 = vpop.f32.mrf.mxu0
  %v2292 = vadd.f32 %v2098, %v2291
  %v2293 = vand.u32 %v1592, 4294901760
  %v2294 = vsub.f32 %v1592, %v2293
  %2295 = vmatmul.f32.gmra.mxu0 %v2294
  %v2296 = vpop.f32.mrf.mxu0
  %v2297 = vadd.f32 %v2102, %v2296
  %v2298 = vand.u32 %v1595, 4294901760
  %v2299 = vsub.f32 %v1595, %v2298
  %2300 = vmatmul.f32.gmra.mxu0 %v2299
  %v2301 = vpop.f32.mrf.mxu0
  %v2302 = vadd.f32 %v2106, %v2301
  %v2303 = vand.u32 %v1598, 4294901760
  %v2304 = vsub.f32 %v1598, %v2303
  %2305 = vmatmul.f32.gmra.mxu0 %v2304
  %v2306 = vpop.f32.mrf.mxu0
  %v2307 = vadd.f32 %v2110, %v2306
  %v2308 = vand.u32 %v1601, 4294901760
  %v2309 = vsub.f32 %v1601, %v2308
  %2310 = vmatmul.f32.gmra.mxu0 %v2309
  %v2311 = vpop.f32.mrf.mxu0
  %v2312 = vadd.f32 %v2114, %v2311
  %v2313 = vand.u32 %v1604, 4294901760
  %v2314 = vsub.f32 %v1604, %v2313
  %2315 = vmatmul.f32.gmra.mxu0 %v2314
  %v2316 = vpop.f32.mrf.mxu0
  %v2317 = vadd.f32 %v2118, %v2316
  %v2318 = vand.u32 %v1607, 4294901760
  %v2319 = vsub.f32 %v1607, %v2318
  %2320 = vmatmul.f32.gmra.mxu0 %v2319
  %v2321 = vpop.f32.mrf.mxu0
  %v2322 = vadd.f32 %v2122, %v2321
  %v2323 = vand.u32 %v1610, 4294901760
  %v2324 = vsub.f32 %v1610, %v2323
  %2325 = vmatmul.f32.gmra.mxu0 %v2324
  %v2326 = vpop.f32.mrf.mxu0
  %v2327 = vadd.f32 %v2126, %v2326
  %v2328 = vand.u32 %v1613, 4294901760
  %v2329 = vsub.f32 %v1613, %v2328
  %2330 = vmatmul.f32.gmra.mxu0 %v2329
  %v2331 = vpop.f32.mrf.mxu0
  %v2332 = vadd.f32 %v2130, %v2331
  %v2333 = vand.u32 %v1616, 4294901760
  %v2334 = vsub.f32 %v1616, %v2333
  %2335 = vmatmul.f32.gmra.mxu0 %v2334
  %v2336 = vpop.f32.mrf.mxu0
  %v2337 = vadd.f32 %v2134, %v2336
  %v2338 = vand.u32 %v1619, 4294901760
  %v2339 = vsub.f32 %v1619, %v2338
  %2340 = vmatmul.f32.gmra.mxu0 %v2339
  %v2341 = vpop.f32.mrf.mxu0
  %v2342 = vadd.f32 %v2138, %v2341
  %v2343 = vand.u32 %v1622, 4294901760
  %v2344 = vsub.f32 %v1622, %v2343
  %2345 = vmatmul.f32.gmra.mxu0 %v2344
  %v2346 = vpop.f32.mrf.mxu0
  %v2347 = vadd.f32 %v2142, %v2346
  %v2348 = vand.u32 %v1625, 4294901760
  %v2349 = vsub.f32 %v1625, %v2348
  %2350 = vmatmul.f32.gmra.mxu0 %v2349
  %v2351 = vpop.f32.mrf.mxu0
  %v2352 = vadd.f32 %v2146, %v2351
  %v2353 = vand.u32 %v1628, 4294901760
  %v2354 = vsub.f32 %v1628, %v2353
  %2355 = vmatmul.f32.gmra.mxu0 %v2354
  %v2356 = vpop.f32.mrf.mxu0
  %v2357 = vadd.f32 %v2150, %v2356
  %v2358 = vand.u32 %v1631, 4294901760
  %v2359 = vsub.f32 %v1631, %v2358
  %2360 = vmatmul.f32.gmra.mxu0 %v2359
  %v2361 = vpop.f32.mrf.mxu0
  %v2362 = vadd.f32 %v2154, %v2361
  %v2363 = vand.u32 %v1634, 4294901760
  %v2364 = vsub.f32 %v1634, %v2363
  %2365 = vmatmul.f32.gmra.mxu0 %v2364
  %v2366 = vpop.f32.mrf.mxu0
  %v2367 = vadd.f32 %v2158, %v2366
  %v2368 = vand.u32 %v1637, 4294901760
  %v2369 = vsub.f32 %v1637, %v2368
  %2370 = vmatmul.f32.gmra.mxu0 %v2369
  %v2371 = vpop.f32.mrf.mxu0
  %v2372 = vadd.f32 %v2162, %v2371
  %v2373 = vand.u32 %v1640, 4294901760
  %v2374 = vsub.f32 %v1640, %v2373
  %2375 = vmatmul.f32.gmra.mxu0 %v2374
  %v2376 = vpop.f32.mrf.mxu0
  %v2377 = vadd.f32 %v2166, %v2376
  %v2378 = vand.u32 %v1643, 4294901760
  %v2379 = vsub.f32 %v1643, %v2378
  %2380 = vmatmul.f32.gmra.mxu0 %v2379
  %v2381 = vpop.f32.mrf.mxu0
  %v2382 = vadd.f32 %v2170, %v2381
  %v2383 = vand.u32 %v1646, 4294901760
  %v2384 = vsub.f32 %v1646, %v2383
  %2385 = vmatmul.f32.gmra.mxu0 %v2384
  %v2386 = vpop.f32.mrf.mxu0
  %v2387 = vadd.f32 %v2174, %v2386
  %v2388 = vand.u32 %v1649, 4294901760
  %v2389 = vsub.f32 %v1649, %v2388
  %2390 = vmatmul.f32.gmra.mxu0 %v2389
  %v2391 = vpop.f32.mrf.mxu0
  %v2392 = vadd.f32 %v2178, %v2391
  %v2393 = vand.u32 %v1652, 4294901760
  %v2394 = vsub.f32 %v1652, %v2393
  %2395 = vmatmul.f32.gmra.mxu0 %v2394
  %v2396 = vpop.f32.mrf.mxu0
  %v2397 = vadd.f32 %v2182, %v2396
  %v2398 = vand.u32 %v1655, 4294901760
  %v2399 = vsub.f32 %v1655, %v2398
  %2400 = vmatmul.f32.gmra.mxu0 %v2399
  %v2401 = vpop.f32.mrf.mxu0
  %v2402 = vadd.f32 %v2186, %v2401
  %v2403 = vand.u32 %v1658, 4294901760
  %v2404 = vsub.f32 %v1658, %v2403
  %2405 = vmatmul.f32.gmra.mxu0 %v2404
  %v2406 = vpop.f32.mrf.mxu0
  %v2407 = vadd.f32 %v2190, %v2406
  %v2408 = vand.u32 %v1661, 4294901760
  %v2409 = vsub.f32 %v1661, %v2408
  %2410 = vmatmul.f32.gmra.mxu0 %v2409
  %v2411 = vpop.f32.mrf.mxu0
  %v2412 = vadd.f32 %v2194, %v2411
  %v2413 = vand.u32 %v1664, 4294901760
  %v2414 = vsub.f32 %v1664, %v2413
  %2415 = vmatmul.f32.gmra.mxu0 %v2414
  %v2416 = vpop.f32.mrf.mxu0
  %v2417 = vadd.f32 %v2198, %v2416
  %v2418 = vand.u32 %v1667, 4294901760
  %v2419 = vsub.f32 %v1667, %v2418
  %2420 = vmatmul.f32.gmra.mxu0 %v2419
  %v2421 = vpop.f32.mrf.mxu0
  %v2422 = vadd.f32 %v2202, %v2421
  %v2423 = vand.u32 %v1670, 4294901760
  %v2424 = vsub.f32 %v1670, %v2423
  %2425 = vmatmul.f32.gmra.mxu0 %v2424
  %v2426 = vpop.f32.mrf.mxu0
  %v2427 = vadd.f32 %v2206, %v2426
  %v2428 = vand.u32 %v1673, 4294901760
  %v2429 = vsub.f32 %v1673, %v2428
  %2430 = vmatmul.f32.gmra.mxu0 %v2429
  %v2431 = vpop.f32.mrf.mxu0
  %v2432 = vadd.f32 %v2210, %v2431
  %v2433 = vand.u32 %v1676, 4294901760
  %v2434 = vsub.f32 %v1676, %v2433
  %2435 = vmatmul.f32.gmra.mxu0 %v2434
  %v2436 = vpop.f32.mrf.mxu0
  %v2437 = vadd.f32 %v2214, %v2436
  %2438 = vdwg.mxu0
  %2439 = vmatpush.msra.mxu0 0.0
  %2440 = vmatpush.msra.mxu0 0.0
  %2441 = vmatpush.msra.mxu0 0.0
  %2442 = vmatpush.msra.mxu0 0.0
  %2443 = vmatpush.msra.mxu0 0.0
  %2444 = vmatpush.msra.mxu0 0.0
  %2445 = vmatpush.msra.mxu0 0.0
  %2446 = vmatpush.msra.mxu0 0.0
  %v2447 = vand.u32 %v1558, 4294901760
  %2448 = vmatpush.msra.mxu0 %v2447
  %v2449 = vand.u32 %v1557, 4294901760
  %2450 = vmatpush.msra.mxu0 %v2449
  %v2451 = vand.u32 %v1556, 4294901760
  %2452 = vmatpush.msra.mxu0 %v2451
  %v2453 = vand.u32 %v1555, 4294901760
  %2454 = vmatpush.msra.mxu0 %v2453
  %v2455 = vand.u32 %v1554, 4294901760
  %2456 = vmatpush.msra.mxu0 %v2455
  %v2457 = vand.u32 %v1553, 4294901760
  %2458 = vmatpush.msra.mxu0 %v2457
  %v2459 = vand.u32 %v1552, 4294901760
  %2460 = vmatpush.msra.mxu0 %v2459
  %v2461 = vand.u32 %v1551, 4294901760
  %2462 = vmatpush.msra.mxu0 %v2461
  %v2463 = vand.u32 %v1565, 4294901760
  %v2464 = vsub.f32 %v1565, %v2463
  %v2465 = vand.u32 %v2464, 4294901760
  %2466 = vmatmul.f32.gmra.mxu0 %v2465
  %v2467 = vpop.f32.mrf.mxu0
  %v2468 = vadd.f32 %v2252, %v2467
  %v2469 = vand.u32 %v1568, 4294901760
  %v2470 = vsub.f32 %v1568, %v2469
  %v2471 = vand.u32 %v2470, 4294901760
  %2472 = vmatmul.f32.gmra.mxu0 %v2471
  %v2473 = vpop.f32.mrf.mxu0
  %v2474 = vadd.f32 %v2257, %v2473
  %v2475 = vand.u32 %v1571, 4294901760
  %v2476 = vsub.f32 %v1571, %v2475
  %v2477 = vand.u32 %v2476, 4294901760
  %2478 = vmatmul.f32.gmra.mxu0 %v2477
  %v2479 = vpop.f32.mrf.mxu0
  %v2480 = vadd.f32 %v2262, %v2479
  %v2481 = vand.u32 %v1574, 4294901760
  %v2482 = vsub.f32 %v1574, %v2481
  %v2483 = vand.u32 %v2482, 4294901760
  %2484 = vmatmul.f32.gmra.mxu0 %v2483
  %v2485 = vpop.f32.mrf.mxu0
  %v2486 = vadd.f32 %v2267, %v2485
  %v2487 = vand.u32 %v1577, 4294901760
  %v2488 = vsub.f32 %v1577, %v2487
  %v2489 = vand.u32 %v2488, 4294901760
  %2490 = vmatmul.f32.gmra.mxu0 %v2489
  %v2491 = vpop.f32.mrf.mxu0
  %v2492 = vadd.f32 %v2272, %v2491
  %v2493 = vand.u32 %v1580, 4294901760
  %v2494 = vsub.f32 %v1580, %v2493
  %v2495 = vand.u32 %v2494, 4294901760
  %2496 = vmatmul.f32.gmra.mxu0 %v2495
  %v2497 = vpop.f32.mrf.mxu0
  %v2498 = vadd.f32 %v2277, %v2497
  %v2499 = vand.u32 %v1583, 4294901760
  %v2500 = vsub.f32 %v1583, %v2499
  %v2501 = vand.u32 %v2500, 4294901760
  %2502 = vmatmul.f32.gmra.mxu0 %v2501
  %v2503 = vpop.f32.mrf.mxu0
  %v2504 = vadd.f32 %v2282, %v2503
  %v2505 = vand.u32 %v1586, 4294901760
  %v2506 = vsub.f32 %v1586, %v2505
  %v2507 = vand.u32 %v2506, 4294901760
  %2508 = vmatmul.f32.gmra.mxu0 %v2507
  %v2509 = vpop.f32.mrf.mxu0
  %v2510 = vadd.f32 %v2287, %v2509
  %v2511 = vand.u32 %v1589, 4294901760
  %v2512 = vsub.f32 %v1589, %v2511
  %v2513 = vand.u32 %v2512, 4294901760
  %2514 = vmatmul.f32.gmra.mxu0 %v2513
  %v2515 = vpop.f32.mrf.mxu0
  %v2516 = vadd.f32 %v2292, %v2515
  %v2517 = vand.u32 %v1592, 4294901760
  %v2518 = vsub.f32 %v1592, %v2517
  %v2519 = vand.u32 %v2518, 4294901760
  %2520 = vmatmul.f32.gmra.mxu0 %v2519
  %v2521 = vpop.f32.mrf.mxu0
  %v2522 = vadd.f32 %v2297, %v2521
  %v2523 = vand.u32 %v1595, 4294901760
  %v2524 = vsub.f32 %v1595, %v2523
  %v2525 = vand.u32 %v2524, 4294901760
  %2526 = vmatmul.f32.gmra.mxu0 %v2525
  %v2527 = vpop.f32.mrf.mxu0
  %v2528 = vadd.f32 %v2302, %v2527
  %v2529 = vand.u32 %v1598, 4294901760
  %v2530 = vsub.f32 %v1598, %v2529
  %v2531 = vand.u32 %v2530, 4294901760
  %2532 = vmatmul.f32.gmra.mxu0 %v2531
  %v2533 = vpop.f32.mrf.mxu0
  %v2534 = vadd.f32 %v2307, %v2533
  %v2535 = vand.u32 %v1601, 4294901760
  %v2536 = vsub.f32 %v1601, %v2535
  %v2537 = vand.u32 %v2536, 4294901760
  %2538 = vmatmul.f32.gmra.mxu0 %v2537
  %v2539 = vpop.f32.mrf.mxu0
  %v2540 = vadd.f32 %v2312, %v2539
  %v2541 = vand.u32 %v1604, 4294901760
  %v2542 = vsub.f32 %v1604, %v2541
  %v2543 = vand.u32 %v2542, 4294901760
  %2544 = vmatmul.f32.gmra.mxu0 %v2543
  %v2545 = vpop.f32.mrf.mxu0
  %v2546 = vadd.f32 %v2317, %v2545
  %v2547 = vand.u32 %v1607, 4294901760
  %v2548 = vsub.f32 %v1607, %v2547
  %v2549 = vand.u32 %v2548, 4294901760
  %2550 = vmatmul.f32.gmra.mxu0 %v2549
  %v2551 = vpop.f32.mrf.mxu0
  %v2552 = vadd.f32 %v2322, %v2551
  %v2553 = vand.u32 %v1610, 4294901760
  %v2554 = vsub.f32 %v1610, %v2553
  %v2555 = vand.u32 %v2554, 4294901760
  %2556 = vmatmul.f32.gmra.mxu0 %v2555
  %v2557 = vpop.f32.mrf.mxu0
  %v2558 = vadd.f32 %v2327, %v2557
  %v2559 = vand.u32 %v1613, 4294901760
  %v2560 = vsub.f32 %v1613, %v2559
  %v2561 = vand.u32 %v2560, 4294901760
  %2562 = vmatmul.f32.gmra.mxu0 %v2561
  %v2563 = vpop.f32.mrf.mxu0
  %v2564 = vadd.f32 %v2332, %v2563
  %v2565 = vand.u32 %v1616, 4294901760
  %v2566 = vsub.f32 %v1616, %v2565
  %v2567 = vand.u32 %v2566, 4294901760
  %2568 = vmatmul.f32.gmra.mxu0 %v2567
  %v2569 = vpop.f32.mrf.mxu0
  %v2570 = vadd.f32 %v2337, %v2569
  %v2571 = vand.u32 %v1619, 4294901760
  %v2572 = vsub.f32 %v1619, %v2571
  %v2573 = vand.u32 %v2572, 4294901760
  %2574 = vmatmul.f32.gmra.mxu0 %v2573
  %v2575 = vpop.f32.mrf.mxu0
  %v2576 = vadd.f32 %v2342, %v2575
  %v2577 = vand.u32 %v1622, 4294901760
  %v2578 = vsub.f32 %v1622, %v2577
  %v2579 = vand.u32 %v2578, 4294901760
  %2580 = vmatmul.f32.gmra.mxu0 %v2579
  %v2581 = vpop.f32.mrf.mxu0
  %v2582 = vadd.f32 %v2347, %v2581
  %v2583 = vand.u32 %v1625, 4294901760
  %v2584 = vsub.f32 %v1625, %v2583
  %v2585 = vand.u32 %v2584, 4294901760
  %2586 = vmatmul.f32.gmra.mxu0 %v2585
  %v2587 = vpop.f32.mrf.mxu0
  %v2588 = vadd.f32 %v2352, %v2587
  %v2589 = vand.u32 %v1628, 4294901760
  %v2590 = vsub.f32 %v1628, %v2589
  %v2591 = vand.u32 %v2590, 4294901760
  %2592 = vmatmul.f32.gmra.mxu0 %v2591
  %v2593 = vpop.f32.mrf.mxu0
  %v2594 = vadd.f32 %v2357, %v2593
  %v2595 = vand.u32 %v1631, 4294901760
  %v2596 = vsub.f32 %v1631, %v2595
  %v2597 = vand.u32 %v2596, 4294901760
  %2598 = vmatmul.f32.gmra.mxu0 %v2597
  %v2599 = vpop.f32.mrf.mxu0
  %v2600 = vadd.f32 %v2362, %v2599
  %v2601 = vand.u32 %v1634, 4294901760
  %v2602 = vsub.f32 %v1634, %v2601
  %v2603 = vand.u32 %v2602, 4294901760
  %2604 = vmatmul.f32.gmra.mxu0 %v2603
  %v2605 = vpop.f32.mrf.mxu0
  %v2606 = vadd.f32 %v2367, %v2605
  %v2607 = vand.u32 %v1637, 4294901760
  %v2608 = vsub.f32 %v1637, %v2607
  %v2609 = vand.u32 %v2608, 4294901760
  %2610 = vmatmul.f32.gmra.mxu0 %v2609
  %v2611 = vpop.f32.mrf.mxu0
  %v2612 = vadd.f32 %v2372, %v2611
  %v2613 = vand.u32 %v1640, 4294901760
  %v2614 = vsub.f32 %v1640, %v2613
  %v2615 = vand.u32 %v2614, 4294901760
  %2616 = vmatmul.f32.gmra.mxu0 %v2615
  %v2617 = vpop.f32.mrf.mxu0
  %v2618 = vadd.f32 %v2377, %v2617
  %v2619 = vand.u32 %v1643, 4294901760
  %v2620 = vsub.f32 %v1643, %v2619
  %v2621 = vand.u32 %v2620, 4294901760
  %2622 = vmatmul.f32.gmra.mxu0 %v2621
  %v2623 = vpop.f32.mrf.mxu0
  %v2624 = vadd.f32 %v2382, %v2623
  %v2625 = vand.u32 %v1646, 4294901760
  %v2626 = vsub.f32 %v1646, %v2625
  %v2627 = vand.u32 %v2626, 4294901760
  %2628 = vmatmul.f32.gmra.mxu0 %v2627
  %v2629 = vpop.f32.mrf.mxu0
  %v2630 = vadd.f32 %v2387, %v2629
  %v2631 = vand.u32 %v1649, 4294901760
  %v2632 = vsub.f32 %v1649, %v2631
  %v2633 = vand.u32 %v2632, 4294901760
  %2634 = vmatmul.f32.gmra.mxu0 %v2633
  %v2635 = vpop.f32.mrf.mxu0
  %v2636 = vadd.f32 %v2392, %v2635
  %v2637 = vand.u32 %v1652, 4294901760
  %v2638 = vsub.f32 %v1652, %v2637
  %v2639 = vand.u32 %v2638, 4294901760
  %2640 = vmatmul.f32.gmra.mxu0 %v2639
  %v2641 = vpop.f32.mrf.mxu0
  %v2642 = vadd.f32 %v2397, %v2641
  %v2643 = vand.u32 %v1655, 4294901760
  %v2644 = vsub.f32 %v1655, %v2643
  %v2645 = vand.u32 %v2644, 4294901760
  %2646 = vmatmul.f32.gmra.mxu0 %v2645
  %v2647 = vpop.f32.mrf.mxu0
  %v2648 = vadd.f32 %v2402, %v2647
  %v2649 = vand.u32 %v1658, 4294901760
  %v2650 = vsub.f32 %v1658, %v2649
  %v2651 = vand.u32 %v2650, 4294901760
  %2652 = vmatmul.f32.gmra.mxu0 %v2651
  %v2653 = vpop.f32.mrf.mxu0
  %v2654 = vadd.f32 %v2407, %v2653
  %v2655 = vand.u32 %v1661, 4294901760
  %v2656 = vsub.f32 %v1661, %v2655
  %v2657 = vand.u32 %v2656, 4294901760
  %2658 = vmatmul.f32.gmra.mxu0 %v2657
  %v2659 = vpop.f32.mrf.mxu0
  %v2660 = vadd.f32 %v2412, %v2659
  %v2661 = vand.u32 %v1664, 4294901760
  %v2662 = vsub.f32 %v1664, %v2661
  %v2663 = vand.u32 %v2662, 4294901760
  %2664 = vmatmul.f32.gmra.mxu0 %v2663
  %v2665 = vpop.f32.mrf.mxu0
  %v2666 = vadd.f32 %v2417, %v2665
  %v2667 = vand.u32 %v1667, 4294901760
  %v2668 = vsub.f32 %v1667, %v2667
  %v2669 = vand.u32 %v2668, 4294901760
  %2670 = vmatmul.f32.gmra.mxu0 %v2669
  %v2671 = vpop.f32.mrf.mxu0
  %v2672 = vadd.f32 %v2422, %v2671
  %v2673 = vand.u32 %v1670, 4294901760
  %v2674 = vsub.f32 %v1670, %v2673
  %v2675 = vand.u32 %v2674, 4294901760
  %2676 = vmatmul.f32.gmra.mxu0 %v2675
  %v2677 = vpop.f32.mrf.mxu0
  %v2678 = vadd.f32 %v2427, %v2677
  %v2679 = vand.u32 %v1673, 4294901760
  %v2680 = vsub.f32 %v1673, %v2679
  %v2681 = vand.u32 %v2680, 4294901760
  %2682 = vmatmul.f32.gmra.mxu0 %v2681
  %v2683 = vpop.f32.mrf.mxu0
  %v2684 = vadd.f32 %v2432, %v2683
  %v2685 = vand.u32 %v1676, 4294901760
  %v2686 = vsub.f32 %v1676, %v2685
  %v2687 = vand.u32 %v2686, 4294901760
  %2688 = vmatmul.f32.gmra.mxu0 %v2687
  %v2689 = vpop.f32.mrf.mxu0
  %v2690 = vadd.f32 %v2437, %v2689
  %2691 = vdwg.mxu0
  %2692 = vmatpush.msra.mxu0 0.0
  %2693 = vmatpush.msra.mxu0 0.0
  %2694 = vmatpush.msra.mxu0 0.0
  %2695 = vmatpush.msra.mxu0 0.0
  %2696 = vmatpush.msra.mxu0 0.0
  %2697 = vmatpush.msra.mxu0 0.0
  %2698 = vmatpush.msra.mxu0 0.0
  %2699 = vmatpush.msra.mxu0 0.0
  %v2700 = vand.u32 %v1558, 4294901760
  %v2701 = vsub.f32 %v1558, %v2700
  %v2702 = vand.u32 %v2701, 4294901760
  %2703 = vmatpush.msra.mxu0 %v2702
  %v2704 = vand.u32 %v1557, 4294901760
  %v2705 = vsub.f32 %v1557, %v2704
  %v2706 = vand.u32 %v2705, 4294901760
  %2707 = vmatpush.msra.mxu0 %v2706
  %v2708 = vand.u32 %v1556, 4294901760
  %v2709 = vsub.f32 %v1556, %v2708
  %v2710 = vand.u32 %v2709, 4294901760
  %2711 = vmatpush.msra.mxu0 %v2710
  %v2712 = vand.u32 %v1555, 4294901760
  %v2713 = vsub.f32 %v1555, %v2712
  %v2714 = vand.u32 %v2713, 4294901760
  %2715 = vmatpush.msra.mxu0 %v2714
  %v2716 = vand.u32 %v1554, 4294901760
  %v2717 = vsub.f32 %v1554, %v2716
  %v2718 = vand.u32 %v2717, 4294901760
  %2719 = vmatpush.msra.mxu0 %v2718
  %v2720 = vand.u32 %v1553, 4294901760
  %v2721 = vsub.f32 %v1553, %v2720
  %v2722 = vand.u32 %v2721, 4294901760
  %2723 = vmatpush.msra.mxu0 %v2722
  %v2724 = vand.u32 %v1552, 4294901760
  %v2725 = vsub.f32 %v1552, %v2724
  %v2726 = vand.u32 %v2725, 4294901760
  %2727 = vmatpush.msra.mxu0 %v2726
  %v2728 = vand.u32 %v1551, 4294901760
  %v2729 = vsub.f32 %v1551, %v2728
  %v2730 = vand.u32 %v2729, 4294901760
  %2731 = vmatpush.msra.mxu0 %v2730
  %v2732 = vand.u32 %v1565, 4294901760
  %2733 = vmatmul.f32.gmra.mxu0 %v2732
  %v2734 = vpop.f32.mrf.mxu0
  %v2735 = vadd.f32 %v2468, %v2734
  %v2736 = vand.u32 %v1568, 4294901760
  %2737 = vmatmul.f32.gmra.mxu0 %v2736
  %v2738 = vpop.f32.mrf.mxu0
  %v2739 = vadd.f32 %v2474, %v2738
  %v2740 = vand.u32 %v1571, 4294901760
  %2741 = vmatmul.f32.gmra.mxu0 %v2740
  %v2742 = vpop.f32.mrf.mxu0
  %v2743 = vadd.f32 %v2480, %v2742
  %v2744 = vand.u32 %v1574, 4294901760
  %2745 = vmatmul.f32.gmra.mxu0 %v2744
  %v2746 = vpop.f32.mrf.mxu0
  %v2747 = vadd.f32 %v2486, %v2746
  %v2748 = vand.u32 %v1577, 4294901760
  %2749 = vmatmul.f32.gmra.mxu0 %v2748
  %v2750 = vpop.f32.mrf.mxu0
  %v2751 = vadd.f32 %v2492, %v2750
  %v2752 = vand.u32 %v1580, 4294901760
  %2753 = vmatmul.f32.gmra.mxu0 %v2752
  %v2754 = vpop.f32.mrf.mxu0
  %v2755 = vadd.f32 %v2498, %v2754
  %v2756 = vand.u32 %v1583, 4294901760
  %2757 = vmatmul.f32.gmra.mxu0 %v2756
  %v2758 = vpop.f32.mrf.mxu0
  %v2759 = vadd.f32 %v2504, %v2758
  %v2760 = vand.u32 %v1586, 4294901760
  %2761 = vmatmul.f32.gmra.mxu0 %v2760
  %v2762 = vpop.f32.mrf.mxu0
  %v2763 = vadd.f32 %v2510, %v2762
  %v2764 = vand.u32 %v1589, 4294901760
  %2765 = vmatmul.f32.gmra.mxu0 %v2764
  %v2766 = vpop.f32.mrf.mxu0
  %v2767 = vadd.f32 %v2516, %v2766
  %v2768 = vand.u32 %v1592, 4294901760
  %2769 = vmatmul.f32.gmra.mxu0 %v2768
  %v2770 = vpop.f32.mrf.mxu0
  %v2771 = vadd.f32 %v2522, %v2770
  %v2772 = vand.u32 %v1595, 4294901760
  %2773 = vmatmul.f32.gmra.mxu0 %v2772
  %v2774 = vpop.f32.mrf.mxu0
  %v2775 = vadd.f32 %v2528, %v2774
  %v2776 = vand.u32 %v1598, 4294901760
  %2777 = vmatmul.f32.gmra.mxu0 %v2776
  %v2778 = vpop.f32.mrf.mxu0
  %v2779 = vadd.f32 %v2534, %v2778
  %v2780 = vand.u32 %v1601, 4294901760
  %2781 = vmatmul.f32.gmra.mxu0 %v2780
  %v2782 = vpop.f32.mrf.mxu0
  %v2783 = vadd.f32 %v2540, %v2782
  %v2784 = vand.u32 %v1604, 4294901760
  %2785 = vmatmul.f32.gmra.mxu0 %v2784
  %v2786 = vpop.f32.mrf.mxu0
  %v2787 = vadd.f32 %v2546, %v2786
  %v2788 = vand.u32 %v1607, 4294901760
  %2789 = vmatmul.f32.gmra.mxu0 %v2788
  %v2790 = vpop.f32.mrf.mxu0
  %v2791 = vadd.f32 %v2552, %v2790
  %v2792 = vand.u32 %v1610, 4294901760
  %2793 = vmatmul.f32.gmra.mxu0 %v2792
  %v2794 = vpop.f32.mrf.mxu0
  %v2795 = vadd.f32 %v2558, %v2794
  %v2796 = vand.u32 %v1613, 4294901760
  %2797 = vmatmul.f32.gmra.mxu0 %v2796
  %v2798 = vpop.f32.mrf.mxu0
  %v2799 = vadd.f32 %v2564, %v2798
  %v2800 = vand.u32 %v1616, 4294901760
  %2801 = vmatmul.f32.gmra.mxu0 %v2800
  %v2802 = vpop.f32.mrf.mxu0
  %v2803 = vadd.f32 %v2570, %v2802
  %v2804 = vand.u32 %v1619, 4294901760
  %2805 = vmatmul.f32.gmra.mxu0 %v2804
  %v2806 = vpop.f32.mrf.mxu0
  %v2807 = vadd.f32 %v2576, %v2806
  %v2808 = vand.u32 %v1622, 4294901760
  %2809 = vmatmul.f32.gmra.mxu0 %v2808
  %v2810 = vpop.f32.mrf.mxu0
  %v2811 = vadd.f32 %v2582, %v2810
  %v2812 = vand.u32 %v1625, 4294901760
  %2813 = vmatmul.f32.gmra.mxu0 %v2812
  %v2814 = vpop.f32.mrf.mxu0
  %v2815 = vadd.f32 %v2588, %v2814
  %v2816 = vand.u32 %v1628, 4294901760
  %2817 = vmatmul.f32.gmra.mxu0 %v2816
  %v2818 = vpop.f32.mrf.mxu0
  %v2819 = vadd.f32 %v2594, %v2818
  %v2820 = vand.u32 %v1631, 4294901760
  %2821 = vmatmul.f32.gmra.mxu0 %v2820
  %v2822 = vpop.f32.mrf.mxu0
  %v2823 = vadd.f32 %v2600, %v2822
  %v2824 = vand.u32 %v1634, 4294901760
  %2825 = vmatmul.f32.gmra.mxu0 %v2824
  %v2826 = vpop.f32.mrf.mxu0
  %v2827 = vadd.f32 %v2606, %v2826
  %v2828 = vand.u32 %v1637, 4294901760
  %2829 = vmatmul.f32.gmra.mxu0 %v2828
  %v2830 = vpop.f32.mrf.mxu0
  %v2831 = vadd.f32 %v2612, %v2830
  %v2832 = vand.u32 %v1640, 4294901760
  %2833 = vmatmul.f32.gmra.mxu0 %v2832
  %v2834 = vpop.f32.mrf.mxu0
  %v2835 = vadd.f32 %v2618, %v2834
  %v2836 = vand.u32 %v1643, 4294901760
  %2837 = vmatmul.f32.gmra.mxu0 %v2836
  %v2838 = vpop.f32.mrf.mxu0
  %v2839 = vadd.f32 %v2624, %v2838
  %v2840 = vand.u32 %v1646, 4294901760
  %2841 = vmatmul.f32.gmra.mxu0 %v2840
  %v2842 = vpop.f32.mrf.mxu0
  %v2843 = vadd.f32 %v2630, %v2842
  %v2844 = vand.u32 %v1649, 4294901760
  %2845 = vmatmul.f32.gmra.mxu0 %v2844
  %v2846 = vpop.f32.mrf.mxu0
  %v2847 = vadd.f32 %v2636, %v2846
  %v2848 = vand.u32 %v1652, 4294901760
  %2849 = vmatmul.f32.gmra.mxu0 %v2848
  %v2850 = vpop.f32.mrf.mxu0
  %v2851 = vadd.f32 %v2642, %v2850
  %v2852 = vand.u32 %v1655, 4294901760
  %2853 = vmatmul.f32.gmra.mxu0 %v2852
  %v2854 = vpop.f32.mrf.mxu0
  %v2855 = vadd.f32 %v2648, %v2854
  %v2856 = vand.u32 %v1658, 4294901760
  %2857 = vmatmul.f32.gmra.mxu0 %v2856
  %v2858 = vpop.f32.mrf.mxu0
  %v2859 = vadd.f32 %v2654, %v2858
  %v2860 = vand.u32 %v1661, 4294901760
  %2861 = vmatmul.f32.gmra.mxu0 %v2860
  %v2862 = vpop.f32.mrf.mxu0
  %v2863 = vadd.f32 %v2660, %v2862
  %v2864 = vand.u32 %v1664, 4294901760
  %2865 = vmatmul.f32.gmra.mxu0 %v2864
  %v2866 = vpop.f32.mrf.mxu0
  %v2867 = vadd.f32 %v2666, %v2866
  %v2868 = vand.u32 %v1667, 4294901760
  %2869 = vmatmul.f32.gmra.mxu0 %v2868
  %v2870 = vpop.f32.mrf.mxu0
  %v2871 = vadd.f32 %v2672, %v2870
  %v2872 = vand.u32 %v1670, 4294901760
  %2873 = vmatmul.f32.gmra.mxu0 %v2872
  %v2874 = vpop.f32.mrf.mxu0
  %v2875 = vadd.f32 %v2678, %v2874
  %v2876 = vand.u32 %v1673, 4294901760
  %2877 = vmatmul.f32.gmra.mxu0 %v2876
  %v2878 = vpop.f32.mrf.mxu0
  %v2879 = vadd.f32 %v2684, %v2878
  %v2880 = vand.u32 %v1676, 4294901760
  %2881 = vmatmul.f32.gmra.mxu0 %v2880
  %v2882 = vpop.f32.mrf.mxu0
  %v2883 = vadd.f32 %v2690, %v2882
  %2884 = vdwg.mxu0
  %2885 = vmatpush.msra.mxu0 0.0
  %2886 = vmatpush.msra.mxu0 0.0
  %2887 = vmatpush.msra.mxu0 0.0
  %2888 = vmatpush.msra.mxu0 0.0
  %2889 = vmatpush.msra.mxu0 0.0
  %2890 = vmatpush.msra.mxu0 0.0
  %2891 = vmatpush.msra.mxu0 0.0
  %2892 = vmatpush.msra.mxu0 0.0
  %v2893 = vand.u32 %v1558, 4294901760
  %2894 = vmatpush.msra.mxu0 %v2893
  %v2895 = vand.u32 %v1557, 4294901760
  %2896 = vmatpush.msra.mxu0 %v2895
  %v2897 = vand.u32 %v1556, 4294901760
  %2898 = vmatpush.msra.mxu0 %v2897
  %v2899 = vand.u32 %v1555, 4294901760
  %2900 = vmatpush.msra.mxu0 %v2899
  %v2901 = vand.u32 %v1554, 4294901760
  %2902 = vmatpush.msra.mxu0 %v2901
  %v2903 = vand.u32 %v1553, 4294901760
  %2904 = vmatpush.msra.mxu0 %v2903
  %v2905 = vand.u32 %v1552, 4294901760
  %2906 = vmatpush.msra.mxu0 %v2905
  %v2907 = vand.u32 %v1551, 4294901760
  %2908 = vmatpush.msra.mxu0 %v2907
  %v2909 = vand.u32 %v1565, 4294901760
  %2910 = vmatmul.f32.gmra.mxu0 %v2909
  %v2911 = vpop.f32.mrf.mxu0
  %v2912 = vadd.f32 %v2735, %v2911
  %v2913 = vand.u32 %v1568, 4294901760
  %2914 = vmatmul.f32.gmra.mxu0 %v2913
  %v2915 = vpop.f32.mrf.mxu0
  %v2916 = vadd.f32 %v2739, %v2915
  %v2917 = vand.u32 %v1571, 4294901760
  %2918 = vmatmul.f32.gmra.mxu0 %v2917
  %v2919 = vpop.f32.mrf.mxu0
  %v2920 = vadd.f32 %v2743, %v2919
  %v2921 = vand.u32 %v1574, 4294901760
  %2922 = vmatmul.f32.gmra.mxu0 %v2921
  %v2923 = vpop.f32.mrf.mxu0
  %v2924 = vadd.f32 %v2747, %v2923
  %v2925 = vand.u32 %v1577, 4294901760
  %2926 = vmatmul.f32.gmra.mxu0 %v2925
  %v2927 = vpop.f32.mrf.mxu0
  %v2928 = vadd.f32 %v2751, %v2927
  %v2929 = vand.u32 %v1580, 4294901760
  %2930 = vmatmul.f32.gmra.mxu0 %v2929
  %v2931 = vpop.f32.mrf.mxu0
  %v2932 = vadd.f32 %v2755, %v2931
  %v2933 = vand.u32 %v1583, 4294901760
  %2934 = vmatmul.f32.gmra.mxu0 %v2933
  %v2935 = vpop.f32.mrf.mxu0
  %v2936 = vadd.f32 %v2759, %v2935
  %v2937 = vand.u32 %v1586, 4294901760
  %2938 = vmatmul.f32.gmra.mxu0 %v2937
  %v2939 = vpop.f32.mrf.mxu0
  %v2940 = vadd.f32 %v2763, %v2939
  %v2941 = vand.u32 %v1589, 4294901760
  %2942 = vmatmul.f32.gmra.mxu0 %v2941
  %v2943 = vpop.f32.mrf.mxu0
  %v2944 = vadd.f32 %v2767, %v2943
  %v2945 = vand.u32 %v1592, 4294901760
  %2946 = vmatmul.f32.gmra.mxu0 %v2945
  %v2947 = vpop.f32.mrf.mxu0
  %v2948 = vadd.f32 %v2771, %v2947
  %v2949 = vand.u32 %v1595, 4294901760
  %2950 = vmatmul.f32.gmra.mxu0 %v2949
  %v2951 = vpop.f32.mrf.mxu0
  %v2952 = vadd.f32 %v2775, %v2951
  %v2953 = vand.u32 %v1598, 4294901760
  %2954 = vmatmul.f32.gmra.mxu0 %v2953
  %v2955 = vpop.f32.mrf.mxu0
  %v2956 = vadd.f32 %v2779, %v2955
  %v2957 = vand.u32 %v1601, 4294901760
  %2958 = vmatmul.f32.gmra.mxu0 %v2957
  %v2959 = vpop.f32.mrf.mxu0
  %v2960 = vadd.f32 %v2783, %v2959
  %v2961 = vand.u32 %v1604, 4294901760
  %2962 = vmatmul.f32.gmra.mxu0 %v2961
  %v2963 = vpop.f32.mrf.mxu0
  %v2964 = vadd.f32 %v2787, %v2963
  %v2965 = vand.u32 %v1607, 4294901760
  %2966 = vmatmul.f32.gmra.mxu0 %v2965
  %v2967 = vpop.f32.mrf.mxu0
  %v2968 = vadd.f32 %v2791, %v2967
  %v2969 = vand.u32 %v1610, 4294901760
  %2970 = vmatmul.f32.gmra.mxu0 %v2969
  %v2971 = vpop.f32.mrf.mxu0
  %v2972 = vadd.f32 %v2795, %v2971
  %v2973 = vand.u32 %v1613, 4294901760
  %2974 = vmatmul.f32.gmra.mxu0 %v2973
  %v2975 = vpop.f32.mrf.mxu0
  %v2976 = vadd.f32 %v2799, %v2975
  %v2977 = vand.u32 %v1616, 4294901760
  %2978 = vmatmul.f32.gmra.mxu0 %v2977
  %v2979 = vpop.f32.mrf.mxu0
  %v2980 = vadd.f32 %v2803, %v2979
  %v2981 = vand.u32 %v1619, 4294901760
  %2982 = vmatmul.f32.gmra.mxu0 %v2981
  %v2983 = vpop.f32.mrf.mxu0
  %v2984 = vadd.f32 %v2807, %v2983
  %v2985 = vand.u32 %v1622, 4294901760
  %2986 = vmatmul.f32.gmra.mxu0 %v2985
  %v2987 = vpop.f32.mrf.mxu0
  %v2988 = vadd.f32 %v2811, %v2987
  %v2989 = vand.u32 %v1625, 4294901760
  %2990 = vmatmul.f32.gmra.mxu0 %v2989
  %v2991 = vpop.f32.mrf.mxu0
  %v2992 = vadd.f32 %v2815, %v2991
  %v2993 = vand.u32 %v1628, 4294901760
  %2994 = vmatmul.f32.gmra.mxu0 %v2993
  %v2995 = vpop.f32.mrf.mxu0
  %v2996 = vadd.f32 %v2819, %v2995
  %v2997 = vand.u32 %v1631, 4294901760
  %2998 = vmatmul.f32.gmra.mxu0 %v2997
  %v2999 = vpop.f32.mrf.mxu0
  %v3000 = vadd.f32 %v2823, %v2999
  %v3001 = vand.u32 %v1634, 4294901760
  %3002 = vmatmul.f32.gmra.mxu0 %v3001
  %v3003 = vpop.f32.mrf.mxu0
  %v3004 = vadd.f32 %v2827, %v3003
  %v3005 = vand.u32 %v1637, 4294901760
  %3006 = vmatmul.f32.gmra.mxu0 %v3005
  %v3007 = vpop.f32.mrf.mxu0
  %v3008 = vadd.f32 %v2831, %v3007
  %v3009 = vand.u32 %v1640, 4294901760
  %3010 = vmatmul.f32.gmra.mxu0 %v3009
  %v3011 = vpop.f32.mrf.mxu0
  %v3012 = vadd.f32 %v2835, %v3011
  %v3013 = vand.u32 %v1643, 4294901760
  %3014 = vmatmul.f32.gmra.mxu0 %v3013
  %v3015 = vpop.f32.mrf.mxu0
  %v3016 = vadd.f32 %v2839, %v3015
  %v3017 = vand.u32 %v1646, 4294901760
  %3018 = vmatmul.f32.gmra.mxu0 %v3017
  %v3019 = vpop.f32.mrf.mxu0
  %v3020 = vadd.f32 %v2843, %v3019
  %v3021 = vand.u32 %v1649, 4294901760
  %3022 = vmatmul.f32.gmra.mxu0 %v3021
  %v3023 = vpop.f32.mrf.mxu0
  %v3024 = vadd.f32 %v2847, %v3023
  %v3025 = vand.u32 %v1652, 4294901760
  %3026 = vmatmul.f32.gmra.mxu0 %v3025
  %v3027 = vpop.f32.mrf.mxu0
  %v3028 = vadd.f32 %v2851, %v3027
  %v3029 = vand.u32 %v1655, 4294901760
  %3030 = vmatmul.f32.gmra.mxu0 %v3029
  %v3031 = vpop.f32.mrf.mxu0
  %v3032 = vadd.f32 %v2855, %v3031
  %v3033 = vand.u32 %v1658, 4294901760
  %3034 = vmatmul.f32.gmra.mxu0 %v3033
  %v3035 = vpop.f32.mrf.mxu0
  %v3036 = vadd.f32 %v2859, %v3035
  %v3037 = vand.u32 %v1661, 4294901760
  %3038 = vmatmul.f32.gmra.mxu0 %v3037
  %v3039 = vpop.f32.mrf.mxu0
  %v3040 = vadd.f32 %v2863, %v3039
  %v3041 = vand.u32 %v1664, 4294901760
  %3042 = vmatmul.f32.gmra.mxu0 %v3041
  %v3043 = vpop.f32.mrf.mxu0
  %v3044 = vadd.f32 %v2867, %v3043
  %v3045 = vand.u32 %v1667, 4294901760
  %3046 = vmatmul.f32.gmra.mxu0 %v3045
  %v3047 = vpop.f32.mrf.mxu0
  %v3048 = vadd.f32 %v2871, %v3047
  %v3049 = vand.u32 %v1670, 4294901760
  %3050 = vmatmul.f32.gmra.mxu0 %v3049
  %v3051 = vpop.f32.mrf.mxu0
  %v3052 = vadd.f32 %v2875, %v3051
  %v3053 = vand.u32 %v1673, 4294901760
  %3054 = vmatmul.f32.gmra.mxu0 %v3053
  %v3055 = vpop.f32.mrf.mxu0
  %v3056 = vadd.f32 %v2879, %v3055
  %v3057 = vand.u32 %v1676, 4294901760
  %3058 = vmatmul.f32.gmra.mxu0 %v3057
  %v3059 = vpop.f32.mrf.mxu0
  %v3060 = vadd.f32 %v2883, %v3059
  %3061 = vdwg.mxu0
  %v3062 = vmax.f32 %v2912, 0.0
  %v3063 = vmax.f32 %v2916, 0.0
  %v3064 = vmax.f32 %v2920, 0.0
  %v3065 = vmax.f32 %v2924, 0.0
  %v3066 = vmax.f32 %v2928, 0.0
  %v3067 = vmax.f32 %v2932, 0.0
  %v3068 = vmax.f32 %v2936, 0.0
  %v3069 = vmax.f32 %v2940, 0.0
  %v3070 = vmax.f32 %v2944, 0.0
  %v3071 = vmax.f32 %v2948, 0.0
  %v3072 = vmax.f32 %v2952, 0.0
  %v3073 = vmax.f32 %v2956, 0.0
  %v3074 = vmax.f32 %v2960, 0.0
  %v3075 = vmax.f32 %v2964, 0.0
  %v3076 = vmax.f32 %v2968, 0.0
  %v3077 = vmax.f32 %v2972, 0.0
  %v3078 = vmax.f32 %v2976, 0.0
  %v3079 = vmax.f32 %v2980, 0.0
  %v3080 = vmax.f32 %v2984, 0.0
  %v3081 = vmax.f32 %v2988, 0.0
  %v3082 = vmax.f32 %v2992, 0.0
  %v3083 = vmax.f32 %v2996, 0.0
  %v3084 = vmax.f32 %v3000, 0.0
  %v3085 = vmax.f32 %v3004, 0.0
  %v3086 = vmax.f32 %v3008, 0.0
  %v3087 = vmax.f32 %v3012, 0.0
  %v3088 = vmax.f32 %v3016, 0.0
  %v3089 = vmax.f32 %v3020, 0.0
  %v3090 = vmax.f32 %v3024, 0.0
  %v3091 = vmax.f32 %v3028, 0.0
  %v3092 = vmax.f32 %v3032, 0.0
  %v3093 = vmax.f32 %v3036, 0.0
  %v3094 = vmax.f32 %v3040, 0.0
  %v3095 = vmax.f32 %v3044, 0.0
  %v3096 = vmax.f32 %v3048, 0.0
  %v3097 = vmax.f32 %v3052, 0.0
  %v3098 = vmax.f32 %v3056, 0.0
  %v3099 = vmax.f32 %v3060, 0.0
  %3100 = vst.msk [vmem:[%s5] sm:$0xff] %vm1563, %v3062
  %3101 = vst.msk [vmem:[%s5 + $0x8] sm:$0xff] %vm1563, %v3063
  %3102 = vst.msk [vmem:[%s5 + $0x10] sm:$0xff] %vm1563, %v3064
  %3103 = vst.msk [vmem:[%s5 + $0x18] sm:$0xff] %vm1563, %v3065
  %3104 = vst.msk [vmem:[%s5 + $0x20] sm:$0xff] %vm1563, %v3066
  %3105 = vst.msk [vmem:[%s5 + $0x28] sm:$0xff] %vm1563, %v3067
  %3106 = vst.msk [vmem:[%s5 + $0x30] sm:$0xff] %vm1563, %v3068
  %3107 = vst.msk [vmem:[%s5 + $0x38] sm:$0xff] %vm1563, %v3069
  %3108 = vst.msk [vmem:[%s5 + $0x40] sm:$0xff] %vm1563, %v3070
  %3109 = vst.msk [vmem:[%s5 + $0x48] sm:$0xff] %vm1563, %v3071
  %3110 = vst.msk [vmem:[%s5 + $0x50] sm:$0xff] %vm1563, %v3072
  %3111 = vst.msk [vmem:[%s5 + $0x58] sm:$0xff] %vm1563, %v3073
  %3112 = vst.msk [vmem:[%s5 + $0x60] sm:$0xff] %vm1563, %v3074
  %3113 = vst.msk [vmem:[%s5 + $0x68] sm:$0xff] %vm1563, %v3075
  %3114 = vst.msk [vmem:[%s5 + $0x70] sm:$0xff] %vm1563, %v3076
  %3115 = vst.msk [vmem:[%s5 + $0x78] sm:$0xff] %vm1563, %v3077
  %3116 = vst.msk [vmem:[%s5 + $0x80] sm:$0xff] %vm1563, %v3078
  %3117 = vst.msk [vmem:[%s5 + $0x88] sm:$0xff] %vm1563, %v3079
  %3118 = vst.msk [vmem:[%s5 + $0x90] sm:$0xff] %vm1563, %v3080
  %3119 = vst.msk [vmem:[%s5 + $0x98] sm:$0xff] %vm1563, %v3081
  %3120 = vst.msk [vmem:[%s5 + $0xa0] sm:$0xff] %vm1563, %v3082
  %3121 = vst.msk [vmem:[%s5 + $0xa8] sm:$0xff] %vm1563, %v3083
  %3122 = vst.msk [vmem:[%s5 + $0xb0] sm:$0xff] %vm1563, %v3084
  %3123 = vst.msk [vmem:[%s5 + $0xb8] sm:$0xff] %vm1563, %v3085
  %3124 = vst.msk [vmem:[%s5 + $0xc0] sm:$0xff] %vm1563, %v3086
  %3125 = vst.msk [vmem:[%s5 + $0xc8] sm:$0xff] %vm1563, %v3087
  %3126 = vst.msk [vmem:[%s5 + $0xd0] sm:$0xff] %vm1563, %v3088
  %3127 = vst.msk [vmem:[%s5 + $0xd8] sm:$0xff] %vm1563, %v3089
  %3128 = vst.msk [vmem:[%s5 + $0xe0] sm:$0xff] %vm1563, %v3090
  %3129 = vst.msk [vmem:[%s5 + $0xe8] sm:$0xff] %vm1563, %v3091
  %3130 = vst.msk [vmem:[%s5 + $0xf0] sm:$0xff] %vm1563, %v3092
  %3131 = vst.msk [vmem:[%s5 + $0xf8] sm:$0xff] %vm1563, %v3093
  %3132 = vst.msk [vmem:[%s5 + $0x100] sm:$0xff] %vm1563, %v3094
  %3133 = vst.msk [vmem:[%s5 + $0x108] sm:$0xff] %vm1563, %v3095
  %3134 = vst.msk [vmem:[%s5 + $0x110] sm:$0xff] %vm1563, %v3096
  %3135 = vst.msk [vmem:[%s5 + $0x118] sm:$0xff] %vm1563, %v3097
  %3136 = vst.msk [vmem:[%s5 + $0x120] sm:$0xff] %vm1563, %v3098
  %3137 = vst.msk [vmem:[%s5 + $0x128] sm:$0xff] %vm1563, %v3099
  // Predicated region
  $region22: #{_forward_impl.1} parent=0 // pred_check
    _
  $region23: #{_forward_impl.1} parent=0 // pred_check_branch
    %3139 = sbr.rel (0) target = $region25
  $region24: #{_forward_impl.1} parent=0 // pred_region
    _
  $region25: #{_forward_impl.1} parent=0 // pred_fallthru
    _
  // Predicated region
  $region26: #{_forward_impl.1} parent=0 // pred_check
    _
  $region27: #{_forward_impl.1} parent=0 // pred_check_branch
    %3141 = sbr.rel (0) target = $region29
  $region28: #{_forward_impl.1} parent=0 // pred_region
    _
  $region29: #{_forward_impl.1} parent=0 // pred_fallthru
    _

</llo_original>
